<compile_context>
chip_gen: v6e
topology: v6e:2x2x1
jax: 0.10.0
libtpu: 0.0.40
codegen_flags: <defaults>
</compile_context>

<pallas_src>
import functools

import jax
import jax.numpy as jnp
from jax.experimental import pallas as pl
from jax.experimental.pallas import tpu as pltpu

LANE = 128


def _round_up(n, m):
    return ((n + m - 1) // m) * m


def _pad2d(a, rows, cols):
    """Zero-pad a 2-D array up to (rows, cols)."""
    return jnp.zeros((rows, cols), a.dtype).at[: a.shape[0], : a.shape[1]].set(a)


# ----------------------------------------------------------------------------
# Pallas kernels
# ----------------------------------------------------------------------------
def _gcn_layer_kernel(adj_ref, x_ref, w_ref, b_ref, o_ref, acc_ref):
    """One GCN layer: relu((adj @ x) @ W + b), tiled over the adjacency contraction.

    Grid = (row tiles i, source/col tiles k).  agg = adj @ x is accumulated
    over k into an f32 VMEM scratch; the feature projection, bias and ReLU run
    once per row tile in the k==last finalize block.
    """
    k = pl.program_id(1)

    @pl.when(k == 0)
    def _init():
        acc_ref[...] = jnp.zeros_like(acc_ref)

    acc_ref[...] += jnp.dot(
        adj_ref[...], x_ref[...], preferred_element_type=jnp.float32
    )

    @pl.when(k == pl.num_programs(1) - 1)
    def _finalize():
        out = jnp.dot(
            acc_ref[...].astype(jnp.bfloat16),
            w_ref[...],
            preferred_element_type=jnp.float32,
        )
        out = out + b_ref[...]                      # bias broadcast over nodes
        o_ref[...] = jnp.maximum(out, 0.0).astype(o_ref.dtype)


def _post_mp_kernel(x_ref, w1_ref, b1_ref, w2_ref, o_ref, *, num_classes):
    """log_softmax((x @ W1 + b1) @ W2, axis=1), masking padded class columns."""
    h = jnp.dot(x_ref[...], w1_ref[...], preferred_element_type=jnp.float32)
    h = h + b1_ref[...]
    # Dropout in post_mp is identity at inference time.
    logits = jnp.dot(
        h.astype(jnp.bfloat16), w2_ref[...], preferred_element_type=jnp.float32
    )
    # Padded class columns must not corrupt the softmax normalizer.
    col = jax.lax.broadcasted_iota(jnp.int32, logits.shape, 1)
    logits = jnp.where(col < num_classes, logits, -1e30)
    m = jnp.max(logits, axis=1, keepdims=True)
    z = logits - m
    lse = jnp.log(jnp.sum(jnp.exp(z), axis=1, keepdims=True))
    o_ref[...] = z - lse


# ----------------------------------------------------------------------------
# pallas_call wrappers
# ----------------------------------------------------------------------------
_VMEM_LIMIT = 48 * 1024 * 1024  # explicit; stays under v7x's 64 MiB physical VMEM


def gcn_layer(adj, x, w, b, *, tm, tk):
    n_pad = adj.shape[0]
    f_in = x.shape[1]
    f_out = w.shape[1]
    grid = (n_pad // tm, n_pad // tk)
    cost = pl.CostEstimate(
        flops=2 * n_pad * n_pad * f_in + 2 * n_pad * f_in * f_out,
        transcendentals=0,
        bytes_accessed=(adj.size * 2 + x.size * 2 + w.size * 2
                        + b.size * 4 + n_pad * f_out * 2),
    )
    return pl.pallas_call(
        _gcn_layer_kernel,
        out_shape=jax.ShapeDtypeStruct((n_pad, f_out), jnp.bfloat16),
        grid_spec=pltpu.PrefetchScalarGridSpec(
            num_scalar_prefetch=0,
            grid=grid,
            in_specs=[
                pl.BlockSpec((tm, tk), lambda i, k: (i, k)),        # adj tile
                pl.BlockSpec((tk, f_in), lambda i, k: (k, 0)),      # x tile
                pl.BlockSpec((f_in, f_out), lambda i, k: (0, 0)),   # W (resident)
                pl.BlockSpec((1, f_out), lambda i, k: (0, 0)),      # b (resident)
            ],
            out_specs=pl.BlockSpec((tm, f_out), lambda i, k: (i, 0)),
            scratch_shapes=[pltpu.VMEM((tm, f_in), jnp.float32)],
        ),
        compiler_params=pltpu.CompilerParams(
            dimension_semantics=("parallel", "arbitrary"),
            vmem_limit_bytes=_VMEM_LIMIT,
        ),
        cost_estimate=cost,
    )(adj, x, w, b)


def post_mp(x, w1, b1, w2, num_classes, *, tm):
    n_pad, h_pad = x.shape
    c_pad = w2.shape[1]
    cost = pl.CostEstimate(
        flops=2 * n_pad * h_pad * h_pad + 2 * n_pad * h_pad * c_pad,
        transcendentals=n_pad * c_pad + n_pad,
        bytes_accessed=(x.size * 2 + w1.size * 2 + b1.size * 4
                        + w2.size * 2 + n_pad * c_pad * 4),
    )
    kernel = functools.partial(_post_mp_kernel, num_classes=num_classes)
    return pl.pallas_call(
        kernel,
        out_shape=jax.ShapeDtypeStruct((n_pad, c_pad), jnp.float32),
        grid_spec=pltpu.PrefetchScalarGridSpec(
            num_scalar_prefetch=0,
            grid=(n_pad // tm,),
            in_specs=[
                pl.BlockSpec((tm, h_pad), lambda i: (i, 0)),
                pl.BlockSpec((h_pad, h_pad), lambda i: (0, 0)),
                pl.BlockSpec((1, h_pad), lambda i: (0, 0)),
                pl.BlockSpec((h_pad, c_pad), lambda i: (0, 0)),
            ],
            out_specs=pl.BlockSpec((tm, c_pad), lambda i: (i, 0)),
        ),
        compiler_params=pltpu.CompilerParams(
            dimension_semantics=("parallel",),
            vmem_limit_bytes=_VMEM_LIMIT,
        ),
        cost_estimate=cost,
    )(x, w1, b1, w2)


# ----------------------------------------------------------------------------
# Plain-JAX glue: adjacency normalization (hoisted, per-graph), params, forward
# ----------------------------------------------------------------------------
def build_norm_adj(edge_index, num_nodes, num_nodes_pad):
    """Dense normalized adjacency (padded to num_nodes_pad, bf16).

    Matches the PyTorch code: deg from edge_index[0]; duplicate edges
    accumulate their normalized weights (same as an uncoalesced scatter-add).
    """
    row, col = edge_index[0], edge_index[1]
    deg = jnp.zeros((num_nodes,), jnp.float32).at[row].add(1.0)
    value = 1.0 / jnp.sqrt(deg[row] * deg[col])
    adj = jnp.zeros((num_nodes_pad, num_nodes_pad), jnp.float32)
    adj = adj.at[row, col].add(value)
    return adj.astype(jnp.bfloat16)


def xavier_normal(key, shape):
    fan_in, fan_out = shape
    std = jnp.sqrt(2.0 / (fan_in + fan_out))
    return (std * jax.random.normal(key, shape)).astype(jnp.float32)


def init_gcn_params(key, in_features, hidden_dims, num_layers, out_features):
    """Xavier-normal weights, zero biases, zero-padded to lane-dense (x128) dims."""
    keys = jax.random.split(key, num_layers + 2)
    fin_p = _round_up(in_features, LANE)
    hid_p = _round_up(hidden_dims, LANE)
    out_p = _round_up(out_features, LANE)
    dims = [in_features] + [hidden_dims] * num_layers
    dims_p = [fin_p] + [hid_p] * num_layers

    layers = []
    for i in range(num_layers):
        w = xavier_normal(keys[i], (dims[i], dims[i + 1]))
        w = _pad2d(w, dims_p[i], dims_p[i + 1]).astype(jnp.bfloat16)
        b = jnp.zeros((1, dims_p[i + 1]), jnp.float32)
        layers.append((w, b))

    w1 = xavier_normal(keys[num_layers], (hidden_dims, hidden_dims))
    w1 = _pad2d(w1, hid_p, hid_p).astype(jnp.bfloat16)
    b1 = jnp.zeros((1, hid_p), jnp.float32)
    w2 = xavier_normal(keys[num_layers + 1], (hidden_dims, out_features))
    w2 = _pad2d(w2, hid_p, out_p).astype(jnp.bfloat16)
    return {"layers": layers, "post_w1": w1, "post_b1": b1, "post_w2": w2}


@functools.partial(jax.jit, static_argnames=("num_nodes", "out_features"))
def gcn_forward(params, x, adj, num_nodes, out_features):
    n_pad = adj.shape[0]
    f_in_pad = params["layers"][0][0].shape[0]
    # MXU-aligned tiles: 256-multiples pay off for big graphs (v6e/v7x MXU is
    # 2x256x256), 128 keeps a multi-tile grid for small/padded N.
    tile = 256 if (n_pad % 256 == 0 and n_pad >= 1024) else 128

    h = _pad2d(x.astype(jnp.float32), n_pad, f_in_pad).astype(jnp.bfloat16)
    for (w, b) in params["layers"]:
        h = gcn_layer(adj, h, w, b, tm=tile, tk=tile)   # relu fused; dropout = id
    out = post_mp(h, params["post_w1"], params["post_b1"], params["post_w2"],
                  out_features, tm=tile)
    return out[:num_nodes, :out_features]


# ----------------------------------------------------------------------------
# Demo
# ----------------------------------------------------------------------------
if __name__ == "__main__":
    key = jax.random.PRNGKey(0)
    k_x, k_e, k_p = jax.random.split(key, 3)

    num_nodes = 200          # padded to 256 -> 2x2 adjacency-tile grid
    in_features = 16
    hidden_dims = 32
    num_layers = 2
    out_features = 8
    num_rand_edges = 800

    # Node features.
    x = jax.random.normal(k_x, (num_nodes, in_features), dtype=jnp.float32)

    # Random edges + self-loops (self-loops guarantee deg > 0 for every node).
    k_src, k_dst = jax.random.split(k_e)
    src = jax.random.randint(k_src, (num_rand_edges,), 0, num_nodes)
    dst = jax.random.randint(k_dst, (num_rand_edges,), 0, num_nodes)
    loop = jnp.arange(num_nodes)
    edge_index = jnp.stack(
        [jnp.concatenate([src, loop]), jnp.concatenate([dst, loop])], axis=0
    ).astype(jnp.int32)

    params = init_gcn_params(k_p, in_features, hidden_dims, num_layers, out_features)

    # Hoisted out of the forward pass: built once per graph, reused across calls.
    n_pad = _round_up(num_nodes, LANE)
    adj = build_norm_adj(edge_index, num_nodes, n_pad)

    out = gcn_forward(params, x, adj, num_nodes, out_features)
    out = jax.block_until_ready(out)

    assert out.shape == (num_nodes, out_features)
    assert bool(jnp.all(jnp.isfinite(out)))
    # log_softmax rows should sum to ~1 after exp.
    row_sums = jnp.sum(jnp.exp(out), axis=1)
    assert bool(jnp.all(jnp.abs(row_sums - 1.0) < 1e-3))

    print("KERNEL_OK")
</pallas_src>

<mosaic_0001>
module attributes {stable_mosaic.version = 11 : i64} {
  func.func @_gcn_layer_kernel(%arg0: i32, %arg1: i32, %arg2: memref<128x128xbf16, #tpu.memory_space<vmem>>, %arg3: memref<128x128xbf16, #tpu.memory_space<vmem>>, %arg4: memref<128x128xbf16, #tpu.memory_space<vmem>>, %arg5: memref<1x128xf32, #tpu.memory_space<vmem>>, %arg6: memref<128x128xbf16, #tpu.memory_space<vmem>>, %arg7: memref<128x128xf32, #tpu.memory_space<vmem>>) attributes {dimension_semantics = [#tpu.dimension_semantics<parallel>, #tpu.dimension_semantics<arbitrary>], iteration_bounds = array<i64: 2, 2>, scalar_prefetch = 0 : i64, scratch_operands = 1 : i64, tpu.core_type = #tpu.core_type<tc>, window_params = [{transform_indices = @transform_0, window_bounds = array<i64: 128, 128>}, {transform_indices = @transform_1, window_bounds = array<i64: 128, 128>}, {pipeline_mode = #tpu.pipeline_mode<synchronous>, transform_indices = @transform_2, window_bounds = array<i64: 128, 128>}, {pipeline_mode = #tpu.pipeline_mode<synchronous>, transform_indices = @transform_3, window_bounds = array<i64: 1, 128>}, {transform_indices = @transform_4, window_bounds = array<i64: 128, 128>}]} {
    %c0_i32 = arith.constant 0 : i32
    %0 = arith.cmpi eq, %arg1, %c0_i32 : i32
    %1 = arith.extui %0 : i1 to i32
    %c0_i32_0 = arith.constant 0 : i32
    %2 = arith.cmpi ne, %1, %c0_i32_0 : i32
    scf.if %2 {
      %cst_9 = arith.constant 0.000000e+00 : f32
      %12 = vector.broadcast %cst_9 : f32 to vector<128x128xf32>
      %c0_10 = arith.constant 0 : index
      %c0_11 = arith.constant 0 : index
      %13 = vector.load %arg7[%c0_10, %c0_11] : memref<128x128xf32, #tpu.memory_space<vmem>>, vector<128x128xf32>
      tpu.vector_store %arg7[%c0_10, %c0_11], %12 {strides = array<i32>} : memref<128x128xf32, #tpu.memory_space<vmem>>, vector<128x128xf32>,
    } else {
    }
    %c0 = arith.constant 0 : index
    %c0_1 = arith.constant 0 : index
    %3 = vector.load %arg7[%c0, %c0_1] : memref<128x128xf32, #tpu.memory_space<vmem>>, vector<128x128xf32>
    %c0_2 = arith.constant 0 : index
    %c0_3 = arith.constant 0 : index
    %4 = vector.load %arg2[%c0_2, %c0_3] : memref<128x128xbf16, #tpu.memory_space<vmem>>, vector<128x128xbf16>
    %c0_4 = arith.constant 0 : index
    %c0_5 = arith.constant 0 : index
    %5 = vector.load %arg3[%c0_4, %c0_5] : memref<128x128xbf16, #tpu.memory_space<vmem>>, vector<128x128xbf16>
    %cst = arith.constant dense<0.000000e+00> : vector<128x128xf32>
    %6 = tpu.matmul %4, %5, %cst {dimension_numbers = #tpu.dot_dimension_numbers<[1], [0], [0], [1], [0, 0, 1, 1], [], []>} : vector<128x128xbf16>, vector<128x128xbf16>, vector<128x128xf32> -> vector<128x128xf32>
    %7 = arith.addf %3, %6 : vector<128x128xf32>
    %c0_6 = arith.constant 0 : index
    %c0_7 = arith.constant 0 : index
    %8 = vector.load %arg7[%c0_6, %c0_7] : memref<128x128xf32, #tpu.memory_space<vmem>>, vector<128x128xf32>
    tpu.vector_store %arg7[%c0_6, %c0_7], %7 {strides = array<i32>} : memref<128x128xf32, #tpu.memory_space<vmem>>, vector<128x128xf32>,
    %c1_i32 = arith.constant 1 : i32
    %9 = arith.cmpi eq, %arg1, %c1_i32 : i32
    %10 = arith.extui %9 : i1 to i32
    %c0_i32_8 = arith.constant 0 : i32
    %11 = arith.cmpi ne, %10, %c0_i32_8 : i32
    scf.if %11 {
      %c0_9 = arith.constant 0 : index
      %c0_10 = arith.constant 0 : index
      %12 = vector.load %arg7[%c0_9, %c0_10] : memref<128x128xf32, #tpu.memory_space<vmem>>, vector<128x128xf32>
      %13 = arith.truncf %12 : vector<128x128xf32> to vector<128x128xbf16>
      %c0_11 = arith.constant 0 : index
      %c0_12 = arith.constant 0 : index
      %14 = vector.load %arg4[%c0_11, %c0_12] : memref<128x128xbf16, #tpu.memory_space<vmem>>, vector<128x128xbf16>
      %cst_13 = arith.constant dense<0.000000e+00> : vector<128x128xf32>
      %15 = tpu.matmul %13, %14, %cst_13 {dimension_numbers = #tpu.dot_dimension_numbers<[1], [0], [0], [1], [0, 0, 1, 1], [], []>} : vector<128x128xbf16>, vector<128x128xbf16>, vector<128x128xf32> -> vector<128x128xf32>
      %c0_14 = arith.constant 0 : index
      %c0_15 = arith.constant 0 : index
      %16 = vector.load %arg5[%c0_14, %c0_15] : memref<1x128xf32, #tpu.memory_space<vmem>>, vector<1x128xf32>
      %17 = vector.broadcast %16 : vector<1x128xf32> to vector<128x128xf32>
      %18 = arith.addf %15, %17 : vector<128x128xf32>
      %cst_16 = arith.constant 0.000000e+00 : f32
      %19 = vector.broadcast %cst_16 : f32 to vector<128x128xf32>
      %20 = arith.maximumf %18, %19 : vector<128x128xf32>
      %21 = arith.truncf %20 : vector<128x128xf32> to vector<128x128xbf16>
      %c0_17 = arith.constant 0 : index
      %c0_18 = arith.constant 0 : index
      %22 = vector.load %arg6[%c0_17, %c0_18] : memref<128x128xbf16, #tpu.memory_space<vmem>>, vector<128x128xbf16>
      tpu.vector_store %arg6[%c0_17, %c0_18], %21 {strides = array<i32>} : memref<128x128xbf16, #tpu.memory_space<vmem>>, vector<128x128xbf16>,
    } else {
    }
    return
  }
  func.func @transform_0(%arg0: i32, %arg1: i32) -> (i32, i32) {
    %c0_i32 = arith.constant 0 : i32
    return %arg0, %arg1 : i32, i32
  }
  func.func @transform_1(%arg0: i32, %arg1: i32) -> (i32, i32) {
    %c0_i32 = arith.constant 0 : i32
    %c0_i32_0 = arith.constant 0 : i32
    return %arg1, %c0_i32 : i32, i32
  }
  func.func @transform_2(%arg0: i32, %arg1: i32) -> (i32, i32) {
    %c0_i32 = arith.constant 0 : i32
    %c0_i32_0 = arith.constant 0 : i32
    %c0_i32_1 = arith.constant 0 : i32
    return %c0_i32, %c0_i32_0 : i32, i32
  }
  func.func @transform_3(%arg0: i32, %arg1: i32) -> (i32, i32) {
    %c0_i32 = arith.constant 0 : i32
    %c0_i32_0 = arith.constant 0 : i32
    %c0_i32_1 = arith.constant 0 : i32
    return %c0_i32, %c0_i32_0 : i32, i32
  }
  func.func @transform_4(%arg0: i32, %arg1: i32) -> (i32, i32) {
    %c0_i32 = arith.constant 0 : i32
    %c0_i32_0 = arith.constant 0 : i32
    return %arg0, %c0_i32 : i32, i32
  }
}

module attributes {stable_mosaic.version = 11 : i64} {
  func.func @_post_mp_kernel(%arg0: i32, %arg1: memref<128x128xbf16, #tpu.memory_space<vmem>>, %arg2: memref<128x128xbf16, #tpu.memory_space<vmem>>, %arg3: memref<1x128xf32, #tpu.memory_space<vmem>>, %arg4: memref<128x128xbf16, #tpu.memory_space<vmem>>, %arg5: memref<128x128xf32, #tpu.memory_space<vmem>>) attributes {dimension_semantics = [#tpu.dimension_semantics<parallel>], iteration_bounds = array<i64: 2>, scalar_prefetch = 0 : i64, scratch_operands = 0 : i64, tpu.core_type = #tpu.core_type<tc>, window_params = [{transform_indices = @transform_0, window_bounds = array<i64: 128, 128>}, {pipeline_mode = #tpu.pipeline_mode<synchronous>, transform_indices = @transform_1, window_bounds = array<i64: 128, 128>}, {pipeline_mode = #tpu.pipeline_mode<synchronous>, transform_indices = @transform_2, window_bounds = array<i64: 1, 128>}, {pipeline_mode = #tpu.pipeline_mode<synchronous>, transform_indices = @transform_3, window_bounds = array<i64: 128, 128>}, {transform_indices = @transform_4, window_bounds = array<i64: 128, 128>}]} {
    %c0 = arith.constant 0 : index
    %c0_0 = arith.constant 0 : index
    %0 = vector.load %arg1[%c0, %c0_0] : memref<128x128xbf16, #tpu.memory_space<vmem>>, vector<128x128xbf16>
    %c0_1 = arith.constant 0 : index
    %c0_2 = arith.constant 0 : index
    %1 = vector.load %arg2[%c0_1, %c0_2] : memref<128x128xbf16, #tpu.memory_space<vmem>>, vector<128x128xbf16>
    %cst = arith.constant dense<0.000000e+00> : vector<128x128xf32>
    %2 = tpu.matmul %0, %1, %cst {dimension_numbers = #tpu.dot_dimension_numbers<[1], [0], [0], [1], [0, 0, 1, 1], [], []>} : vector<128x128xbf16>, vector<128x128xbf16>, vector<128x128xf32> -> vector<128x128xf32>
    %c0_3 = arith.constant 0 : index
    %c0_4 = arith.constant 0 : index
    %3 = vector.load %arg3[%c0_3, %c0_4] : memref<1x128xf32, #tpu.memory_space<vmem>>, vector<1x128xf32>
    %4 = vector.broadcast %3 : vector<1x128xf32> to vector<128x128xf32>
    %5 = arith.addf %2, %4 : vector<128x128xf32>
    %6 = arith.truncf %5 : vector<128x128xf32> to vector<128x128xbf16>
    %c0_5 = arith.constant 0 : index
    %c0_6 = arith.constant 0 : index
    %7 = vector.load %arg4[%c0_5, %c0_6] : memref<128x128xbf16, #tpu.memory_space<vmem>>, vector<128x128xbf16>
    %cst_7 = arith.constant dense<0.000000e+00> : vector<128x128xf32>
    %8 = tpu.matmul %6, %7, %cst_7 {dimension_numbers = #tpu.dot_dimension_numbers<[1], [0], [0], [1], [0, 0, 1, 1], [], []>} : vector<128x128xbf16>, vector<128x128xbf16>, vector<128x128xf32> -> vector<128x128xf32>
    %9 = tpu.iota {dimensions = array<i32: 1>} : vector<128x128xi32>
    %c8_i32 = arith.constant 8 : i32
    %10 = vector.broadcast %c8_i32 : i32 to vector<128x128xi32>
    %11 = arith.cmpi slt, %9, %10 : vector<128x128xi32>
    %cst_8 = arith.constant -1.000000e+30 : f32
    %12 = vector.broadcast %cst_8 : f32 to vector<128x128xf32>
    %13 = arith.select %11, %8, %12 : vector<128x128xi1>, vector<128x128xf32>
    %cst_9 = arith.constant dense<0xFF800000> : vector<128xf32>
    %14 = vector.multi_reduction <maximumf>, %13, %cst_9 [1] : vector<128x128xf32> to vector<128xf32>
    %15 = vector.shape_cast %14 : vector<128xf32> to vector<128x1xf32>
    %16 = vector.broadcast %15 : vector<128x1xf32> to vector<128x128xf32>
    %17 = arith.subf %13, %16 : vector<128x128xf32>
    %18 = math.exp %17 : vector<128x128xf32>
    %cst_10 = arith.constant dense<0.000000e+00> : vector<128xf32>
    %19 = vector.multi_reduction <add>, %18, %cst_10 [1] : vector<128x128xf32> to vector<128xf32>
    %20 = vector.shape_cast %19 : vector<128xf32> to vector<128x1xf32>
    %21 = math.log %20 : vector<128x1xf32>
    %22 = vector.broadcast %21 : vector<128x1xf32> to vector<128x128xf32>
    %23 = arith.subf %17, %22 : vector<128x128xf32>
    %c0_11 = arith.constant 0 : index
    %c0_12 = arith.constant 0 : index
    %24 = vector.load %arg5[%c0_11, %c0_12] : memref<128x128xf32, #tpu.memory_space<vmem>>, vector<128x128xf32>
    tpu.vector_store %arg5[%c0_11, %c0_12], %23 {strides = array<i32>} : memref<128x128xf32, #tpu.memory_space<vmem>>, vector<128x128xf32>,
    return
  }
  func.func @transform_0(%arg0: i32) -> (i32, i32) {
    %c0_i32 = arith.constant 0 : i32
    %c0_i32_0 = arith.constant 0 : i32
    return %arg0, %c0_i32 : i32, i32
  }
  func.func @transform_1(%arg0: i32) -> (i32, i32) {
    %c0_i32 = arith.constant 0 : i32
    %c0_i32_0 = arith.constant 0 : i32
    %c0_i32_1 = arith.constant 0 : i32
    return %c0_i32, %c0_i32_0 : i32, i32
  }
  func.func @transform_2(%arg0: i32) -> (i32, i32) {
    %c0_i32 = arith.constant 0 : i32
    %c0_i32_0 = arith.constant 0 : i32
    %c0_i32_1 = arith.constant 0 : i32
    return %c0_i32, %c0_i32_0 : i32, i32
  }
  func.func @transform_3(%arg0: i32) -> (i32, i32) {
    %c0_i32 = arith.constant 0 : i32
    %c0_i32_0 = arith.constant 0 : i32
    %c0_i32_1 = arith.constant 0 : i32
    return %c0_i32, %c0_i32_0 : i32, i32
  }
  func.func @transform_4(%arg0: i32) -> (i32, i32) {
    %c0_i32 = arith.constant 0 : i32
    %c0_i32_0 = arith.constant 0 : i32
    return %arg0, %c0_i32 : i32, i32
  }
}

</mosaic_0001>

<llo_original>
// kernel: gcn_forward.3
$region0: #{gcn_forward.3}
  #allocation0 [shape = 'u32[]', space=smem, size = 0x4, offset = 0x4, fixed_abs, tag = 'smem constant byte address 0x4 - core index']
  #allocation1 [shape = 'u32[144,128]{1,0:T(1,128)}', space=vmem, size = 0x12000, scoped, tag = 'internal scratch']
  #allocation2 [shape = 'f32[128,128]{1,0:T(8,128)}', space=vmem, size = 0x10000, scoped, tag = 'scratch operand']
  %s0 = inlined_call_operand.vmem [shape: bf16[256,256], index: 0, kind: input, shape index: {}]
  %s1 = inlined_call_operand.vmem [shape: bf16[256,128], index: 1, kind: input, shape index: {}]
  %s2 = inlined_call_operand.vmem [shape: bf16[128,128], index: 2, kind: input, shape index: {}]
  %s3 = inlined_call_operand.vmem [shape: f32[1,128], index: 3, kind: input, shape index: {}]
  %s4 = inlined_call_operand.vmem [shape: bf16[256,128], index: 4, kind: output, shape index: {}]
  %s5 = sld [smem:[#allocation0]]
  $region98: #{gcn_forward.3} parent=0
    _
  %s7 = ssub.s32 1, %s5
  %s8 = scalar_select 0, %s7, %s5
  $region1: #{gcn_forward.3} parent=0
    #allocation3 [shape = 'u8[65536]{0}', space=vmem, size = 0x10000, scoped, tag = 'input window, operand 0']
    loop: start=0, step=1, limit=6
    $region2: #{gcn_forward.3} parent=1 // loop_pre_header
      _
    $region3: #{gcn_forward.3} parent=1 // loop_header
      %s10 = sphi 0, %s14
      %p11 = scmp.ge.s32.totalorder %s10, 6
      %s17 = sphi 0, %s29
      %s18 = sphi 0, %s25
      %s19 = sphi 0, %s17
      %s20 = sphi 0, %s18
      %s21 = sphi 0, %s19
      %s22 = sphi 0, %s20
      %s34 = sphi 0, %s36
      %s37 = sphi 0, %s34
      %s38 = sphi 0, %s37
      %s54 = sphi 0, %s38
      %s60 = sphi 0, %s62
      %s63 = sphi 0, %s60
      %s64 = sphi 0, %s63
      %s80 = sphi 0, %s64
      %s84 = sphi 0, %s84
      %s86 = sphi 0, %s84
      %s87 = sphi 0, %s86
      %s101 = sphi 0, %s87
      %s105 = sphi 0, %s105
      %s107 = sphi 0, %s105
      %s108 = sphi 0, %s107
      %s122 = sphi 0, %s108
      %s128 = sphi 0, %s130
      %s131 = sphi 0, %s128
      %s132 = sphi 0, %s131
      %s148 = sphi 0, %s132
    $region4: #{gcn_forward.3} parent=1 // loop_header_branch
      %13 = sbr.rel (%p11) target = $region8
    $region5: #{gcn_forward.3} parent=1 // loop_body
      %s15 = ssub.s32 %s10, 1
      %s16 = ssub.s32 %s10, 2
      %s23 = sadd.s32 1, %s18
      %p24 = scmp.ge.s32.totalorder %s23, 2
      %s25 = scalar_select %p24, 0, %s23
      %s26 = sadd.s32 1, %s17
      %s27 = scalar_select %p24, %s26, %s17
      %p28 = scmp.ge.s32.totalorder %s27, 2
      %s29 = scalar_select %p28, 0, %s27
      %s30 = ssub.s32 %s17, %s29
      %s31 = ssub.s32 %s18, %s25
      %s32 = sor.u32 %s30, %s31
      %p33 = scmp.eq.s32.totalorder %s32, 0
      %s35 = sadd.s32 %s34, 1
      %s36 = scalar_select %p33, %s34, %s35
      %p39 = pneg %p33
      %p40 = scmp.eq.s32.totalorder %s10, 3
      %p41 = por %p39, %p40
      %p42 = scmp.ne.s32.totalorder %s34, %s37
      %p43 = scmp.eq.s32.totalorder %s10, 0
      %p44 = por %p42, %p43
      %p45 = scmp.ne.s32.totalorder %s34, %s37
      %p46 = scmp.eq.s32.totalorder %s15, 3
      %p47 = por %p45, %p46
      %p48 = scmp.ne.s32.totalorder %s37, %s38
      %p49 = scmp.eq.s32.totalorder %s15, 0
      %p50 = por %p48, %p49
      %p51 = scmp.ne.s32.totalorder %s37, %s38
      %p52 = scmp.eq.s32.totalorder %s16, 3
      %p53 = por %p51, %p52
      %p55 = scmp.ne.s32.totalorder %s38, %s54
      %p56 = scmp.eq.s32.totalorder %s16, 0
      %p57 = por %p55, %p56
      %s58 = ssub.s32 %s18, %s25
      %p59 = scmp.eq.s32.totalorder %s58, 0
      %s61 = sadd.s32 %s60, 1
      %s62 = scalar_select %p59, %s60, %s61
      %p65 = pneg %p59
      %p66 = scmp.eq.s32.totalorder %s10, 3
      %p67 = por %p65, %p66
      %p68 = scmp.ne.s32.totalorder %s60, %s63
      %p69 = scmp.eq.s32.totalorder %s10, 0
      %p70 = por %p68, %p69
      %p71 = scmp.ne.s32.totalorder %s60, %s63
      %p72 = scmp.eq.s32.totalorder %s15, 3
      %p73 = por %p71, %p72
      %p74 = scmp.ne.s32.totalorder %s63, %s64
      %p75 = scmp.eq.s32.totalorder %s15, 0
      %p76 = por %p74, %p75
      %p77 = scmp.ne.s32.totalorder %s63, %s64
      %p78 = scmp.eq.s32.totalorder %s16, 3
      %p79 = por %p77, %p78
      %p81 = scmp.ne.s32.totalorder %s64, %s80
      %p82 = scmp.eq.s32.totalorder %s16, 0
      %p83 = por %p81, %p82
      %s85 = sadd.s32 %s84, 1
      %p88 = scmp.eq.s32.totalorder %s10, 3
      %p89 = scmp.ne.s32.totalorder %s84, %s86
      %p90 = scmp.eq.s32.totalorder %s10, 0
      %p91 = por %p89, %p90
      %p92 = scmp.ne.s32.totalorder %s84, %s86
      %p93 = scmp.eq.s32.totalorder %s15, 3
      %p94 = por %p92, %p93
      %p95 = scmp.ne.s32.totalorder %s86, %s87
      %p96 = scmp.eq.s32.totalorder %s15, 0
      %p97 = por %p95, %p96
      %p98 = scmp.ne.s32.totalorder %s86, %s87
      %p99 = scmp.eq.s32.totalorder %s16, 3
      %p100 = por %p98, %p99
      %p102 = scmp.ne.s32.totalorder %s87, %s101
      %p103 = scmp.eq.s32.totalorder %s16, 0
      %p104 = por %p102, %p103
      %s106 = sadd.s32 %s105, 1
      %p109 = scmp.eq.s32.totalorder %s10, 3
      %p110 = scmp.ne.s32.totalorder %s105, %s107
      %p111 = scmp.eq.s32.totalorder %s10, 0
      %p112 = por %p110, %p111
      %p113 = scmp.ne.s32.totalorder %s105, %s107
      %p114 = scmp.eq.s32.totalorder %s15, 3
      %p115 = por %p113, %p114
      %p116 = scmp.ne.s32.totalorder %s107, %s108
      %p117 = scmp.eq.s32.totalorder %s15, 0
      %p118 = por %p116, %p117
      %p119 = scmp.ne.s32.totalorder %s107, %s108
      %p120 = scmp.eq.s32.totalorder %s16, 3
      %p121 = por %p119, %p120
      %p123 = scmp.ne.s32.totalorder %s108, %s122
      %p124 = scmp.eq.s32.totalorder %s16, 0
      %p125 = por %p123, %p124
      %s126 = ssub.s32 %s17, %s29
      %p127 = scmp.eq.s32.totalorder %s126, 0
      %s129 = sadd.s32 %s128, 1
      %s130 = scalar_select %p127, %s128, %s129
      %p133 = pneg %p127
      %p134 = scmp.eq.s32.totalorder %s10, 3
      %p135 = por %p133, %p134
      %p136 = scmp.ne.s32.totalorder %s128, %s131
      %p137 = scmp.eq.s32.totalorder %s10, 0
      %p138 = por %p136, %p137
      %p139 = scmp.ne.s32.totalorder %s128, %s131
      %p140 = scmp.eq.s32.totalorder %s15, 3
      %p141 = por %p139, %p140
      %p142 = scmp.ne.s32.totalorder %s131, %s132
      %p143 = scmp.eq.s32.totalorder %s15, 0
      %p144 = por %p142, %p143
      %p145 = scmp.ne.s32.totalorder %s131, %s132
      %p146 = scmp.eq.s32.totalorder %s16, 3
      %p147 = por %p145, %p146
      %p149 = scmp.ne.s32.totalorder %s132, %s148
      %p150 = scmp.eq.s32.totalorder %s16, 0
      %p151 = por %p149, %p150
      %p152 = scmp.le.s32.totalorder 1, %s10
      %p153 = scmp.lt.s32.totalorder %s10, 5
      %p154 = pnand %p152, %p153
      %p155 = pneg %p154
      // Predicated region
      $region9: #{gcn_forward.3} parent=5 // pred_check
        _
      $region10: #{gcn_forward.3} parent=5 // pred_check_branch
        %157 = sbr.rel (%p154) target = $region12
      $region11: #{gcn_forward.3} parent=5 // pred_region
        %s158 = ssub.s32 %s10, 1
        // Predicated region
        $region13: #{gcn_forward.3} parent=11 // pred_check
          %p159 = pneg %p97
        $region14: #{gcn_forward.3} parent=11 // pred_check_branch
          %161 = sbr.rel (%p159) target = $region16
        $region15: #{gcn_forward.3} parent=11 // pred_region
          _
        $region16: #{gcn_forward.3} parent=11 // pred_fallthru
          _
        // Predicated region
        $region17: #{gcn_forward.3} parent=11 // pred_check
          %p162 = pneg %p118
        $region18: #{gcn_forward.3} parent=11 // pred_check_branch
          %164 = sbr.rel (%p162) target = $region20
        $region19: #{gcn_forward.3} parent=11 // pred_region
          _
        $region20: #{gcn_forward.3} parent=11 // pred_fallthru
          _
      $region12: #{gcn_forward.3} parent=5 // pred_fallthru
        _
      %p165 = scmp.lt.s32.totalorder %s10, 4
      // Predicated region
      $region21: #{gcn_forward.3} parent=5 // pred_check
        %p166 = pneg %p165
      $region22: #{gcn_forward.3} parent=5 // pred_check_branch
        %168 = sbr.rel (%p166) target = $region24
      $region23: #{gcn_forward.3} parent=5 // pred_region
        // Predicated region
        $region25: #{gcn_forward.3} parent=23 // pred_check
          %p169 = pneg %p44
        $region26: #{gcn_forward.3} parent=23 // pred_check_branch
          %171 = sbr.rel (%p169) target = $region28
        $region27: #{gcn_forward.3} parent=23 // pred_region
          %s172 = sand.u32 %s34, 1
          %s173 = sand.u32 %s34, 1
          %s174 = smul.addr %s173, 64
          %s175 = scalar_lea.vmem [#allocation3], %s174
          %s176 = smul.u32 16, %s17
          %s177 = smul.addr %s176, 2
          %s178 = sadd.s32 %s18, %s177
          %s179 = smul.addr %s178, 4
          %s180 = scalar_lea.vmem %s0, %s179
          // Predicated region
          $region29: #{gcn_forward.3} parent=27 // pred_check
            _
          $region30: #{gcn_forward.3} parent=27 // pred_check_branch
            %182 = sbr.rel (0) target = $region32
          $region31: #{gcn_forward.3} parent=27 // pred_region
            // Predicated region
            $region33: #{gcn_forward.3} parent=31 // pred_check
              _
            $region34: #{gcn_forward.3} parent=31 // pred_check_branch
              %184 = sbr.rel target = $region36
            $region35: #{gcn_forward.3} parent=31 // pred_region
              // Predicated region
              $region48: #{gcn_forward.3} parent=35 // pred_check
                _
              $region49: #{gcn_forward.3} parent=35 // pred_check_branch
                %230 = sbr.rel (0) target = $region51
              $region50: #{gcn_forward.3} parent=35 // pred_region
                loop: start=0, step=1, limit=1
                $region52: #{gcn_forward.3} parent=50 // loop_pre_header
                  _
                $region53: #{gcn_forward.3} parent=50 // loop_header
                  %s232 = sphi 0, %s236
                  %p233 = scmp.ge.s32.totalorder %s232, 1
                  %s237 = sphi %s180, %s180
                  %s238 = sphi %s175, %s175
                $region54: #{gcn_forward.3} parent=50 // loop_header_branch
                  %235 = sbr.rel (%p233) target = $region58
                $region55: #{gcn_forward.3} parent=50 // loop_body
                  _
                $region56: #{gcn_forward.3} parent=50 // loop_footer
                  %s236 = sadd.s32 1, %s232
                $region57: #{gcn_forward.3} parent=50 // loop_footer_branch
                  %231 = sbr.rel target = $region53
                $region58: #{gcn_forward.3} parent=50 // loop_exit
                  _
                %s240 = ssub.s32 16, 1
                loop: start=0, step=1, limit=1
                $region59: #{gcn_forward.3} parent=50 // loop_pre_header
                  _
                $region60: #{gcn_forward.3} parent=50 // loop_header
                  %s242 = sphi 0, %s246
                  %p243 = scmp.ge.s32.totalorder %s242, 1
                  %s247 = sphi %s180, %s180
                  %s248 = sphi %s175, %s175
                $region61: #{gcn_forward.3} parent=50 // loop_header_branch
                  %245 = sbr.rel (%p243) target = $region65
                $region62: #{gcn_forward.3} parent=50 // loop_body
                  %v249 = vld [vmem:[%s247] sm:%s240]
                  %250 = vst [vmem:[%s248] sm:%s240] %v249
                  %v251 = vld [vmem:[%s247 + $0x8] sm:%s240]
                  %252 = vst [vmem:[%s248 + $0x4] sm:%s240] %v251
                  %v253 = vld [vmem:[%s247 + $0x10] sm:%s240]
                  %254 = vst [vmem:[%s248 + $0x8] sm:%s240] %v253
                  %v255 = vld [vmem:[%s247 + $0x18] sm:%s240]
                  %256 = vst [vmem:[%s248 + $0xc] sm:%s240] %v255
                  %v257 = vld [vmem:[%s247 + $0x20] sm:%s240]
                  %258 = vst [vmem:[%s248 + $0x10] sm:%s240] %v257
                  %v259 = vld [vmem:[%s247 + $0x28] sm:%s240]
                  %260 = vst [vmem:[%s248 + $0x14] sm:%s240] %v259
                  %v261 = vld [vmem:[%s247 + $0x30] sm:%s240]
                  %262 = vst [vmem:[%s248 + $0x18] sm:%s240] %v261
                  %v263 = vld [vmem:[%s247 + $0x38] sm:%s240]
                  %264 = vst [vmem:[%s248 + $0x1c] sm:%s240] %v263
                  %v265 = vld [vmem:[%s247 + $0x40] sm:%s240]
                  %266 = vst [vmem:[%s248 + $0x20] sm:%s240] %v265
                  %v267 = vld [vmem:[%s247 + $0x48] sm:%s240]
                  %268 = vst [vmem:[%s248 + $0x24] sm:%s240] %v267
                  %v269 = vld [vmem:[%s247 + $0x50] sm:%s240]
                  %270 = vst [vmem:[%s248 + $0x28] sm:%s240] %v269
                  %v271 = vld [vmem:[%s247 + $0x58] sm:%s240]
                  %272 = vst [vmem:[%s248 + $0x2c] sm:%s240] %v271
                  %v273 = vld [vmem:[%s247 + $0x60] sm:%s240]
                  %274 = vst [vmem:[%s248 + $0x30] sm:%s240] %v273
                  %v275 = vld [vmem:[%s247 + $0x68] sm:%s240]
                  %276 = vst [vmem:[%s248 + $0x34] sm:%s240] %v275
                  %v277 = vld [vmem:[%s247 + $0x70] sm:%s240]
                  %278 = vst [vmem:[%s248 + $0x38] sm:%s240] %v277
                  %v279 = vld [vmem:[%s247 + $0x78] sm:%s240]
                  %280 = vst [vmem:[%s248 + $0x3c] sm:%s240] %v279
                $region63: #{gcn_forward.3} parent=50 // loop_footer
                  %s246 = sadd.s32 1, %s242
                $region64: #{gcn_forward.3} parent=50 // loop_footer_branch
                  %241 = sbr.rel target = $region60
                $region65: #{gcn_forward.3} parent=50 // loop_exit
                  _
              $region51: #{gcn_forward.3} parent=35 // pred_fallthru
                _
            $region36: #{gcn_forward.3} parent=31 // pred_fallthru
              _
            // Predicated region
            $region37: #{gcn_forward.3} parent=31 // pred_check
              _
            $region38: #{gcn_forward.3} parent=31 // pred_check_branch
              %186 = sbr.rel (0) target = $region40
            $region39: #{gcn_forward.3} parent=31 // pred_region
              %s188 = ssub.s32 16, 1
              loop: start=0, step=1, limit=1
              $region41: #{gcn_forward.3} parent=39 // loop_pre_header
                _
              $region42: #{gcn_forward.3} parent=39 // loop_header
                %s190 = sphi 0, %s194
                %p191 = scmp.ge.s32.totalorder %s190, 1
                %s195 = sphi %s180, %s180
                %s196 = sphi %s175, %s175
              $region43: #{gcn_forward.3} parent=39 // loop_header_branch
                %193 = sbr.rel (%p191) target = $region47
              $region44: #{gcn_forward.3} parent=39 // loop_body
                %v197 = vld [vmem:[%s195] sm:%s188]
                %198 = vst [vmem:[%s196] sm:%s188] %v197
                %v199 = vld [vmem:[%s195 + $0x8] sm:%s188]
                %200 = vst [vmem:[%s196 + $0x4] sm:%s188] %v199
                %v201 = vld [vmem:[%s195 + $0x10] sm:%s188]
                %202 = vst [vmem:[%s196 + $0x8] sm:%s188] %v201
                %v203 = vld [vmem:[%s195 + $0x18] sm:%s188]
                %204 = vst [vmem:[%s196 + $0xc] sm:%s188] %v203
                %v205 = vld [vmem:[%s195 + $0x20] sm:%s188]
                %206 = vst [vmem:[%s196 + $0x10] sm:%s188] %v205
                %v207 = vld [vmem:[%s195 + $0x28] sm:%s188]
                %208 = vst [vmem:[%s196 + $0x14] sm:%s188] %v207
                %v209 = vld [vmem:[%s195 + $0x30] sm:%s188]
                %210 = vst [vmem:[%s196 + $0x18] sm:%s188] %v209
                %v211 = vld [vmem:[%s195 + $0x38] sm:%s188]
                %212 = vst [vmem:[%s196 + $0x1c] sm:%s188] %v211
                %v213 = vld [vmem:[%s195 + $0x40] sm:%s188]
                %214 = vst [vmem:[%s196 + $0x20] sm:%s188] %v213
                %v215 = vld [vmem:[%s195 + $0x48] sm:%s188]
                %216 = vst [vmem:[%s196 + $0x24] sm:%s188] %v215
                %v217 = vld [vmem:[%s195 + $0x50] sm:%s188]
                %218 = vst [vmem:[%s196 + $0x28] sm:%s188] %v217
                %v219 = vld [vmem:[%s195 + $0x58] sm:%s188]
                %220 = vst [vmem:[%s196 + $0x2c] sm:%s188] %v219
                %v221 = vld [vmem:[%s195 + $0x60] sm:%s188]
                %222 = vst [vmem:[%s196 + $0x30] sm:%s188] %v221
                %v223 = vld [vmem:[%s195 + $0x68] sm:%s188]
                %224 = vst [vmem:[%s196 + $0x34] sm:%s188] %v223
                %v225 = vld [vmem:[%s195 + $0x70] sm:%s188]
                %226 = vst [vmem:[%s196 + $0x38] sm:%s188] %v225
                %v227 = vld [vmem:[%s195 + $0x78] sm:%s188]
                %228 = vst [vmem:[%s196 + $0x3c] sm:%s188] %v227
              $region45: #{gcn_forward.3} parent=39 // loop_footer
                %s194 = sadd.s32 1, %s190
              $region46: #{gcn_forward.3} parent=39 // loop_footer_branch
                %189 = sbr.rel target = $region42
              $region47: #{gcn_forward.3} parent=39 // loop_exit
                _
            $region40: #{gcn_forward.3} parent=31 // pred_fallthru
              _
          $region32: #{gcn_forward.3} parent=27 // pred_fallthru
            _
          %281 = vnop
        $region28: #{gcn_forward.3} parent=23 // pred_fallthru
          _
        // Predicated region
        $region66: #{gcn_forward.3} parent=23 // pred_check
          %p282 = pneg %p70
        $region67: #{gcn_forward.3} parent=23 // pred_check_branch
          %284 = sbr.rel (%p282) target = $region69
        $region68: #{gcn_forward.3} parent=23 // pred_region
          %s285 = smul.u32 16, %s18
          %p286 = scmp.lt.s32.totalorder %s285, 31
          %s287 = scalar_select %p286, %s285, 31
          %s288 = smul.addr %s287, 4
          %s289 = scalar_lea.vmem %s1, %s288
          %s290 = smul.u32 16, %s18
        $region69: #{gcn_forward.3} parent=23 // pred_fallthru
          _
      $region24: #{gcn_forward.3} parent=5 // pred_fallthru
        _
      %p291 = scmp.le.s32.totalorder 1, %s10
      %p292 = scmp.lt.s32.totalorder %s10, 5
      %p293 = pnand %p291, %p292
      %p294 = pneg %p293
      // Predicated region
      $region70: #{gcn_forward.3} parent=5 // pred_check
        _
      $region71: #{gcn_forward.3} parent=5 // pred_check_branch
        %296 = sbr.rel (%p293) target = $region73
      $region72: #{gcn_forward.3} parent=5 // pred_region
        %s297 = ssub.s32 %s10, 1
        %s298 = sand.u32 %s37, 1
        %s299 = sand.u32 %s37, 1
        %s300 = smul.addr %s299, 64
        %s301 = scalar_lea.vmem [#allocation3], %s300
        // Predicated region
        $region74: #{gcn_forward.3} parent=72 // pred_check
          %p302 = pneg %p50
        $region75: #{gcn_forward.3} parent=72 // pred_check_branch
          %304 = sbr.rel (%p302) target = $region77
        $region76: #{gcn_forward.3} parent=72 // pred_region
          _
        $region77: #{gcn_forward.3} parent=72 // pred_fallthru
          _
        %s305 = sand.u32 %s37, 1
        %s306 = sand.u32 %s37, 1
        %s307 = smul.addr %s306, 64
        %s308 = scalar_lea.vmem [#allocation3], %s307
        %p309 = pneg %p50
        %p310 = pneg %p47
        %s311 = smul.u32 16, %s20
        %p312 = scmp.lt.s32.totalorder %s311, 31
        %s313 = scalar_select %p312, %s311, 31
        %s314 = smul.addr %s313, 4
        %s315 = scalar_lea.vmem %s1, %s314
        %p316 = pneg %p76
        %p317 = pneg %p73
        %p318 = pneg %p97
        %p319 = pneg %p94
        %p320 = pneg %p118
        %p321 = pneg %p115
        %p322 = pneg %p144
        %p323 = pneg %p141
        %s324 = smul.u32 16, %s19
        %p325 = scmp.lt.s32.totalorder %s324, 31
        %s326 = scalar_select %p325, %s324, 31
        %s327 = smul.addr %s326, 4
        %s328 = scalar_lea.vmem %s4, %s327
        %s329 = smul.u32 16, %s19
        %s330 = smul.u32 16, %s20
        %p331 = scmp.lt.s32.totalorder %s330, 31
        %s332 = scalar_select %p331, %s330, 31
        %s333 = smul.addr %s332, 4
        %s334 = scalar_lea.vmem %s1, %s333
        %s335 = smul.u32 16, %s20
        %s336 = smul.u32 16, %s19
        %p337 = scmp.lt.s32.totalorder %s336, 31
        %s338 = scalar_select %p337, %s336, 31
        %s339 = smul.addr %s338, 4
        %s340 = scalar_lea.vmem %s4, %s339
        %s341 = smul.u32 16, %s19
        %p343 = scmp.eq.s32.totalorder %s20, 0
        // Predicated region
        $region78: #{gcn_forward.3} parent=72 // pred_check
          %p344 = pneg %p343
        $region79: #{gcn_forward.3} parent=72 // pred_check_branch
          %346 = sbr.rel (%p344) target = $region81
        $region80: #{gcn_forward.3} parent=72 // pred_region
          %347 = vst [vmem:[#allocation2] sm:$0xff] 0.0
          %348 = vst [vmem:[#allocation2 + $0x8] sm:$0xff] 0.0
          %349 = vst [vmem:[#allocation2 + $0x10] sm:$0xff] 0.0
          %350 = vst [vmem:[#allocation2 + $0x18] sm:$0xff] 0.0
          %351 = vst [vmem:[#allocation2 + $0x20] sm:$0xff] 0.0
          %352 = vst [vmem:[#allocation2 + $0x28] sm:$0xff] 0.0
          %353 = vst [vmem:[#allocation2 + $0x30] sm:$0xff] 0.0
          %354 = vst [vmem:[#allocation2 + $0x38] sm:$0xff] 0.0
          %355 = vst [vmem:[#allocation2 + $0x40] sm:$0xff] 0.0
          %356 = vst [vmem:[#allocation2 + $0x48] sm:$0xff] 0.0
          %357 = vst [vmem:[#allocation2 + $0x50] sm:$0xff] 0.0
          %358 = vst [vmem:[#allocation2 + $0x58] sm:$0xff] 0.0
          %359 = vst [vmem:[#allocation2 + $0x60] sm:$0xff] 0.0
          %360 = vst [vmem:[#allocation2 + $0x68] sm:$0xff] 0.0
          %361 = vst [vmem:[#allocation2 + $0x70] sm:$0xff] 0.0
          %362 = vst [vmem:[#allocation2 + $0x78] sm:$0xff] 0.0
        $region81: #{gcn_forward.3} parent=72 // pred_fallthru
          _
        %v363 = vld [vmem:[#allocation2] sm:$0xff]
        %v364 = vld [vmem:[#allocation2 + $0x8] sm:$0xff]
        %v365 = vld [vmem:[#allocation2 + $0x10] sm:$0xff]
        %v366 = vld [vmem:[#allocation2 + $0x18] sm:$0xff]
        %v367 = vld [vmem:[#allocation2 + $0x20] sm:$0xff]
        %v368 = vld [vmem:[#allocation2 + $0x28] sm:$0xff]
        %v369 = vld [vmem:[#allocation2 + $0x30] sm:$0xff]
        %v370 = vld [vmem:[#allocation2 + $0x38] sm:$0xff]
        %v371 = vld [vmem:[#allocation2 + $0x40] sm:$0xff]
        %v372 = vld [vmem:[#allocation2 + $0x48] sm:$0xff]
        %v373 = vld [vmem:[#allocation2 + $0x50] sm:$0xff]
        %v374 = vld [vmem:[#allocation2 + $0x58] sm:$0xff]
        %v375 = vld [vmem:[#allocation2 + $0x60] sm:$0xff]
        %v376 = vld [vmem:[#allocation2 + $0x68] sm:$0xff]
        %v377 = vld [vmem:[#allocation2 + $0x70] sm:$0xff]
        %v378 = vld [vmem:[#allocation2 + $0x78] sm:$0xff]
        %v379 = vld [vmem:[%s301] sm:$0xf]
        %v380 = vld [vmem:[%s301 + $0x4] sm:$0xf]
        %v381 = vld [vmem:[%s301 + $0x8] sm:$0xf]
        %v382 = vld [vmem:[%s301 + $0xc] sm:$0xf]
        %v383 = vld [vmem:[%s301 + $0x10] sm:$0xf]
        %v384 = vld [vmem:[%s301 + $0x14] sm:$0xf]
        %v385 = vld [vmem:[%s301 + $0x18] sm:$0xf]
        %v386 = vld [vmem:[%s301 + $0x1c] sm:$0xf]
        %v387 = vld [vmem:[%s301 + $0x20] sm:$0xf]
        %v388 = vld [vmem:[%s301 + $0x24] sm:$0xf]
        %v389 = vld [vmem:[%s301 + $0x28] sm:$0xf]
        %v390 = vld [vmem:[%s301 + $0x2c] sm:$0xf]
        %v391 = vld [vmem:[%s301 + $0x30] sm:$0xf]
        %v392 = vld [vmem:[%s301 + $0x34] sm:$0xf]
        %v393 = vld [vmem:[%s301 + $0x38] sm:$0xf]
        %v394 = vld [vmem:[%s301 + $0x3c] sm:$0xf]
        %v395 = vld [vmem:[%s334] sm:$0xf]
        %v396 = vld [vmem:[%s334 + $0x4] sm:$0xf]
        %v397 = vld [vmem:[%s334 + $0x8] sm:$0xf]
        %v398 = vld [vmem:[%s334 + $0xc] sm:$0xf]
        %v399 = vld [vmem:[%s334 + $0x10] sm:$0xf]
        %v400 = vld [vmem:[%s334 + $0x14] sm:$0xf]
        %v401 = vld [vmem:[%s334 + $0x18] sm:$0xf]
        %v402 = vld [vmem:[%s334 + $0x1c] sm:$0xf]
        %v403 = vld [vmem:[%s334 + $0x20] sm:$0xf]
        %v404 = vld [vmem:[%s334 + $0x24] sm:$0xf]
        %v405 = vld [vmem:[%s334 + $0x28] sm:$0xf]
        %v406 = vld [vmem:[%s334 + $0x2c] sm:$0xf]
        %v407 = vld [vmem:[%s334 + $0x30] sm:$0xf]
        %v408 = vld [vmem:[%s334 + $0x34] sm:$0xf]
        %v409 = vld [vmem:[%s334 + $0x38] sm:$0xf]
        %v410 = vld [vmem:[%s334 + $0x3c] sm:$0xf]
        %v427 = vunpack.c.l.b16 %v379
        %v428 = vunpack.c.l.b16 %v380
        %v429 = vunpack.c.l.b16 %v381
        %v430 = vunpack.c.l.b16 %v382
        %v431 = vunpack.c.l.b16 %v383
        %v432 = vunpack.c.l.b16 %v384
        %v433 = vunpack.c.l.b16 %v385
        %v434 = vunpack.c.l.b16 %v386
        %v435 = vunpack.c.l.b16 %v387
        %v436 = vunpack.c.l.b16 %v388
        %v437 = vunpack.c.l.b16 %v389
        %v438 = vunpack.c.l.b16 %v390
        %v439 = vunpack.c.l.b16 %v391
        %v440 = vunpack.c.l.b16 %v392
        %v441 = vunpack.c.l.b16 %v393
        %v442 = vunpack.c.l.b16 %v394
        %v443 = vpack.c.b16 %v428, %v427
        %v444 = vpack.c.b16 %v430, %v429
        %v445 = vpack.c.b16 %v432, %v431
        %v446 = vpack.c.b16 %v434, %v433
        %v447 = vpack.c.b16 %v436, %v435
        %v448 = vpack.c.b16 %v438, %v437
        %v449 = vpack.c.b16 %v440, %v439
        %v450 = vpack.c.b16 %v442, %v441
        %v475 = vunpack.c.l.b16 %v395
        %v476 = vunpack.c.l.b16 %v396
        %v477 = vunpack.c.l.b16 %v397
        %v478 = vunpack.c.l.b16 %v398
        %v479 = vunpack.c.l.b16 %v399
        %v480 = vunpack.c.l.b16 %v400
        %v481 = vunpack.c.l.b16 %v401
        %v482 = vunpack.c.l.b16 %v402
        %v483 = vunpack.c.l.b16 %v403
        %v484 = vunpack.c.l.b16 %v404
        %v485 = vunpack.c.l.b16 %v405
        %v486 = vunpack.c.l.b16 %v406
        %v487 = vunpack.c.l.b16 %v407
        %v488 = vunpack.c.l.b16 %v408
        %v489 = vunpack.c.l.b16 %v409
        %v490 = vunpack.c.l.b16 %v410
        %v491 = vpack.c.b16 %v476, %v475
        %v492 = vpack.c.b16 %v478, %v477
        %v493 = vpack.c.b16 %v480, %v479
        %v494 = vpack.c.b16 %v482, %v481
        %v495 = vpack.c.b16 %v484, %v483
        %v496 = vpack.c.b16 %v486, %v485
        %v497 = vpack.c.b16 %v488, %v487
        %v498 = vpack.c.b16 %v490, %v489
        %507 = vmatprep.subr.bf16.mxu0 0
        %508 = vmatpush1.bf16.msra.mxu0 %v498
        %509 = vmatprep.subr.bf16.mxu0 0
        %510 = vmatpush1.bf16.msra.mxu0 %v497
        %511 = vmatprep.subr.bf16.mxu0 0
        %512 = vmatpush1.bf16.msra.mxu0 %v496
        %513 = vmatprep.subr.bf16.mxu0 0
        %514 = vmatpush1.bf16.msra.mxu0 %v495
        %515 = vmatprep.subr.bf16.mxu0 0
        %516 = vmatpush1.bf16.msra.mxu0 %v494
        %517 = vmatprep.subr.bf16.mxu0 0
        %518 = vmatpush1.bf16.msra.mxu0 %v493
        %519 = vmatprep.subr.bf16.mxu0 0
        %520 = vmatpush1.bf16.msra.mxu0 %v492
        %521 = vmatprep.subr.bf16.mxu0 0
        %522 = vmatpush1.bf16.msra.mxu0 %v491
        %523 = vmatprep.subr.bf16.mxu0 0
        %524 = vmatpush2.bf16.msra.mxu0 0
        %525 = vmatprep.subr.bf16.mxu0 0
        %526 = vmatpush2.bf16.msra.mxu0 0
        %527 = vmatprep.subr.bf16.mxu0 0
        %528 = vmatpush2.bf16.msra.mxu0 0
        %529 = vmatprep.subr.bf16.mxu0 0
        %530 = vmatpush2.bf16.msra.mxu0 0
        %531 = vmatprep.subr.bf16.mxu0 0
        %532 = vmatpush2.bf16.msra.mxu0 0
        %533 = vmatprep.subr.bf16.mxu0 0
        %534 = vmatpush2.bf16.msra.mxu0 0
        %535 = vmatprep.subr.bf16.mxu0 0
        %536 = vmatpush2.bf16.msra.mxu0 0
        %537 = vmatprep.subr.bf16.mxu0 0
        %538 = vmatpush2.bf16.msra.mxu0 0
        %539 = vmatprep.mubr.bf16.mxu0 0
        %540 = vmatmul.mubr.bf16.gmra.mxu0 %v443
        %v541 = vpop.f32.mrf.mxu0
        %v542 = vadd.f32 0.0, %v541
        %v543 = vpop.f32.mrf.mxu0
        %v544 = vpop.f32.mrf.mxu0
        %v545 = vadd.f32 0.0, %v544
        %v546 = vpop.f32.mrf.mxu0
        %547 = vmatprep.mubr.bf16.mxu0 0
        %548 = vmatmul.mubr.bf16.gmra.mxu0 %v444
        %v549 = vpop.f32.mrf.mxu0
        %v550 = vadd.f32 0.0, %v549
        %v551 = vpop.f32.mrf.mxu0
        %v552 = vpop.f32.mrf.mxu0
        %v553 = vadd.f32 0.0, %v552
        %v554 = vpop.f32.mrf.mxu0
        %555 = vmatprep.mubr.bf16.mxu0 0
        %556 = vmatmul.mubr.bf16.gmra.mxu0 %v445
        %v557 = vpop.f32.mrf.mxu0
        %v558 = vadd.f32 0.0, %v557
        %v559 = vpop.f32.mrf.mxu0
        %v560 = vpop.f32.mrf.mxu0
        %v561 = vadd.f32 0.0, %v560
        %v562 = vpop.f32.mrf.mxu0
        %563 = vmatprep.mubr.bf16.mxu0 0
        %564 = vmatmul.mubr.bf16.gmra.mxu0 %v446
        %v565 = vpop.f32.mrf.mxu0
        %v566 = vadd.f32 0.0, %v565
        %v567 = vpop.f32.mrf.mxu0
        %v568 = vpop.f32.mrf.mxu0
        %v569 = vadd.f32 0.0, %v568
        %v570 = vpop.f32.mrf.mxu0
        %571 = vmatprep.mubr.bf16.mxu0 0
        %572 = vmatmul.mubr.bf16.gmra.mxu0 %v447
        %v573 = vpop.f32.mrf.mxu0
        %v574 = vadd.f32 0.0, %v573
        %v575 = vpop.f32.mrf.mxu0
        %v576 = vpop.f32.mrf.mxu0
        %v577 = vadd.f32 0.0, %v576
        %v578 = vpop.f32.mrf.mxu0
        %579 = vmatprep.mubr.bf16.mxu0 0
        %580 = vmatmul.mubr.bf16.gmra.mxu0 %v448
        %v581 = vpop.f32.mrf.mxu0
        %v582 = vadd.f32 0.0, %v581
        %v583 = vpop.f32.mrf.mxu0
        %v584 = vpop.f32.mrf.mxu0
        %v585 = vadd.f32 0.0, %v584
        %v586 = vpop.f32.mrf.mxu0
        %587 = vmatprep.mubr.bf16.mxu0 0
        %588 = vmatmul.mubr.bf16.gmra.mxu0 %v449
        %v589 = vpop.f32.mrf.mxu0
        %v590 = vadd.f32 0.0, %v589
        %v591 = vpop.f32.mrf.mxu0
        %v592 = vpop.f32.mrf.mxu0
        %v593 = vadd.f32 0.0, %v592
        %v594 = vpop.f32.mrf.mxu0
        %595 = vmatprep.mubr.bf16.mxu0 0
        %596 = vmatmul.mubr.bf16.gmra.mxu0 %v450
        %v597 = vpop.f32.mrf.mxu0
        %v598 = vadd.f32 0.0, %v597
        %v599 = vpop.f32.mrf.mxu0
        %v600 = vpop.f32.mrf.mxu0
        %v601 = vadd.f32 0.0, %v600
        %v602 = vpop.f32.mrf.mxu0
        %603 = vdwg.mxu0
        %v604 = vadd.f32 %v363, %v542
        %v605 = vadd.f32 %v364, %v545
        %v606 = vadd.f32 %v365, %v550
        %v607 = vadd.f32 %v366, %v553
        %v608 = vadd.f32 %v367, %v558
        %v609 = vadd.f32 %v368, %v561
        %v610 = vadd.f32 %v369, %v566
        %v611 = vadd.f32 %v370, %v569
        %v612 = vadd.f32 %v371, %v574
        %v613 = vadd.f32 %v372, %v577
        %v614 = vadd.f32 %v373, %v582
        %v615 = vadd.f32 %v374, %v585
        %v616 = vadd.f32 %v375, %v590
        %v617 = vadd.f32 %v376, %v593
        %v618 = vadd.f32 %v377, %v598
        %v619 = vadd.f32 %v378, %v601
        %620 = vst [vmem:[#allocation2] sm:$0xff] %v604
        %621 = vst [vmem:[#allocation2 + $0x8] sm:$0xff] %v605
        %622 = vst [vmem:[#allocation2 + $0x10] sm:$0xff] %v606
        %623 = vst [vmem:[#allocation2 + $0x18] sm:$0xff] %v607
        %624 = vst [vmem:[#allocation2 + $0x20] sm:$0xff] %v608
        %625 = vst [vmem:[#allocation2 + $0x28] sm:$0xff] %v609
        %626 = vst [vmem:[#allocation2 + $0x30] sm:$0xff] %v610
        %627 = vst [vmem:[#allocation2 + $0x38] sm:$0xff] %v611
        %628 = vst [vmem:[#allocation2 + $0x40] sm:$0xff] %v612
        %629 = vst [vmem:[#allocation2 + $0x48] sm:$0xff] %v613
        %630 = vst [vmem:[#allocation2 + $0x50] sm:$0xff] %v614
        %631 = vst [vmem:[#allocation2 + $0x58] sm:$0xff] %v615
        %632 = vst [vmem:[#allocation2 + $0x60] sm:$0xff] %v616
        %633 = vst [vmem:[#allocation2 + $0x68] sm:$0xff] %v617
        %634 = vst [vmem:[#allocation2 + $0x70] sm:$0xff] %v618
        %635 = vst [vmem:[#allocation2 + $0x78] sm:$0xff] %v619
        %p636 = scmp.eq.s32.totalorder %s20, 1
        // Predicated region
        $region82: #{gcn_forward.3} parent=72 // pred_check
          %p637 = pneg %p636
        $region83: #{gcn_forward.3} parent=72 // pred_check_branch
          %639 = sbr.rel (%p637) target = $region85
        $region84: #{gcn_forward.3} parent=72 // pred_region
          %v640 = vld [vmem:[#allocation2] sm:$0xff]
          %v641 = vld [vmem:[#allocation2 + $0x8] sm:$0xff]
          %v642 = vld [vmem:[#allocation2 + $0x10] sm:$0xff]
          %v643 = vld [vmem:[#allocation2 + $0x18] sm:$0xff]
          %v644 = vld [vmem:[#allocation2 + $0x20] sm:$0xff]
          %v645 = vld [vmem:[#allocation2 + $0x28] sm:$0xff]
          %v646 = vld [vmem:[#allocation2 + $0x30] sm:$0xff]
          %v647 = vld [vmem:[#allocation2 + $0x38] sm:$0xff]
          %v648 = vld [vmem:[#allocation2 + $0x40] sm:$0xff]
          %v649 = vld [vmem:[#allocation2 + $0x48] sm:$0xff]
          %v650 = vld [vmem:[#allocation2 + $0x50] sm:$0xff]
          %v651 = vld [vmem:[#allocation2 + $0x58] sm:$0xff]
          %v652 = vld [vmem:[#allocation2 + $0x60] sm:$0xff]
          %v653 = vld [vmem:[#allocation2 + $0x68] sm:$0xff]
          %v654 = vld [vmem:[#allocation2 + $0x70] sm:$0xff]
          %v655 = vld [vmem:[#allocation2 + $0x78] sm:$0xff]
          %v656 = vpack.c.bf16 %v641, %v640
          %v657 = vpack.c.bf16 %v643, %v642
          %v658 = vpack.c.bf16 %v645, %v644
          %v659 = vpack.c.bf16 %v647, %v646
          %v660 = vpack.c.bf16 %v649, %v648
          %v661 = vpack.c.bf16 %v651, %v650
          %v662 = vpack.c.bf16 %v653, %v652
          %v663 = vpack.c.bf16 %v655, %v654
          %v664 = vld [vmem:[%s2] sm:$0xf]
          %v665 = vld [vmem:[%s2 + $0x4] sm:$0xf]
          %v666 = vld [vmem:[%s2 + $0x8] sm:$0xf]
          %v667 = vld [vmem:[%s2 + $0xc] sm:$0xf]
          %v668 = vld [vmem:[%s2 + $0x10] sm:$0xf]
          %v669 = vld [vmem:[%s2 + $0x14] sm:$0xf]
          %v670 = vld [vmem:[%s2 + $0x18] sm:$0xf]
          %v671 = vld [vmem:[%s2 + $0x1c] sm:$0xf]
          %v672 = vld [vmem:[%s2 + $0x20] sm:$0xf]
          %v673 = vld [vmem:[%s2 + $0x24] sm:$0xf]
          %v674 = vld [vmem:[%s2 + $0x28] sm:$0xf]
          %v675 = vld [vmem:[%s2 + $0x2c] sm:$0xf]
          %v676 = vld [vmem:[%s2 + $0x30] sm:$0xf]
          %v677 = vld [vmem:[%s2 + $0x34] sm:$0xf]
          %v678 = vld [vmem:[%s2 + $0x38] sm:$0xf]
          %v679 = vld [vmem:[%s2 + $0x3c] sm:$0xf]
          %v680 = vld [vmem:[%s3] sm:$0x1]
          %v682 = vlaneseq
          %v683 = vshrl.u32 %v682, 7
          %v684 = vsub.s32 0, %v683
          %v685 = vrot.slane %v680, %v684
          %v703 = vunpack.c.l.b16 %v664
          %v704 = vunpack.c.l.b16 %v665
          %v705 = vunpack.c.l.b16 %v666
          %v706 = vunpack.c.l.b16 %v667
          %v707 = vunpack.c.l.b16 %v668
          %v708 = vunpack.c.l.b16 %v669
          %v709 = vunpack.c.l.b16 %v670
          %v710 = vunpack.c.l.b16 %v671
          %v711 = vunpack.c.l.b16 %v672
          %v712 = vunpack.c.l.b16 %v673
          %v713 = vunpack.c.l.b16 %v674
          %v714 = vunpack.c.l.b16 %v675
          %v715 = vunpack.c.l.b16 %v676
          %v716 = vunpack.c.l.b16 %v677
          %v717 = vunpack.c.l.b16 %v678
          %v718 = vunpack.c.l.b16 %v679
          %v719 = vpack.c.b16 %v704, %v703
          %v720 = vpack.c.b16 %v706, %v705
          %v721 = vpack.c.b16 %v708, %v707
          %v722 = vpack.c.b16 %v710, %v709
          %v723 = vpack.c.b16 %v712, %v711
          %v724 = vpack.c.b16 %v714, %v713
          %v725 = vpack.c.b16 %v716, %v715
          %v726 = vpack.c.b16 %v718, %v717
          %735 = vmatprep.subr.bf16.mxu0 0
          %736 = vmatpush1.bf16.msra.mxu0 %v726
          %737 = vmatprep.subr.bf16.mxu0 0
          %738 = vmatpush1.bf16.msra.mxu0 %v725
          %739 = vmatprep.subr.bf16.mxu0 0
          %740 = vmatpush1.bf16.msra.mxu0 %v724
          %741 = vmatprep.subr.bf16.mxu0 0
          %742 = vmatpush1.bf16.msra.mxu0 %v723
          %743 = vmatprep.subr.bf16.mxu0 0
          %744 = vmatpush1.bf16.msra.mxu0 %v722
          %745 = vmatprep.subr.bf16.mxu0 0
          %746 = vmatpush1.bf16.msra.mxu0 %v721
          %747 = vmatprep.subr.bf16.mxu0 0
          %748 = vmatpush1.bf16.msra.mxu0 %v720
          %749 = vmatprep.subr.bf16.mxu0 0
          %750 = vmatpush1.bf16.msra.mxu0 %v719
          %751 = vmatprep.subr.bf16.mxu0 0
          %752 = vmatpush2.bf16.msra.mxu0 0
          %753 = vmatprep.subr.bf16.mxu0 0
          %754 = vmatpush2.bf16.msra.mxu0 0
          %755 = vmatprep.subr.bf16.mxu0 0
          %756 = vmatpush2.bf16.msra.mxu0 0
          %757 = vmatprep.subr.bf16.mxu0 0
          %758 = vmatpush2.bf16.msra.mxu0 0
          %759 = vmatprep.subr.bf16.mxu0 0
          %760 = vmatpush2.bf16.msra.mxu0 0
          %761 = vmatprep.subr.bf16.mxu0 0
          %762 = vmatpush2.bf16.msra.mxu0 0
          %763 = vmatprep.subr.bf16.mxu0 0
          %764 = vmatpush2.bf16.msra.mxu0 0
          %765 = vmatprep.subr.bf16.mxu0 0
          %766 = vmatpush2.bf16.msra.mxu0 0
          %767 = vmatprep.mubr.bf16.mxu0 0
          %768 = vmatmul.mubr.bf16.gmra.mxu0 %v656
          %v769 = vpop.f32.mrf.mxu0
          %v770 = vadd.f32 %v685, %v769
          %v771 = vpop.f32.mrf.mxu0
          %v772 = vpop.f32.mrf.mxu0
          %v773 = vadd.f32 %v685, %v772
          %v774 = vpop.f32.mrf.mxu0
          %775 = vmatprep.mubr.bf16.mxu0 0
          %776 = vmatmul.mubr.bf16.gmra.mxu0 %v657
          %v777 = vpop.f32.mrf.mxu0
          %v778 = vadd.f32 %v685, %v777
          %v779 = vpop.f32.mrf.mxu0
          %v780 = vpop.f32.mrf.mxu0
          %v781 = vadd.f32 %v685, %v780
          %v782 = vpop.f32.mrf.mxu0
          %783 = vmatprep.mubr.bf16.mxu0 0
          %784 = vmatmul.mubr.bf16.gmra.mxu0 %v658
          %v785 = vpop.f32.mrf.mxu0
          %v786 = vadd.f32 %v685, %v785
          %v787 = vpop.f32.mrf.mxu0
          %v788 = vpop.f32.mrf.mxu0
          %v789 = vadd.f32 %v685, %v788
          %v790 = vpop.f32.mrf.mxu0
          %791 = vmatprep.mubr.bf16.mxu0 0
          %792 = vmatmul.mubr.bf16.gmra.mxu0 %v659
          %v793 = vpop.f32.mrf.mxu0
          %v794 = vadd.f32 %v685, %v793
          %v795 = vpop.f32.mrf.mxu0
          %v796 = vpop.f32.mrf.mxu0
          %v797 = vadd.f32 %v685, %v796
          %v798 = vpop.f32.mrf.mxu0
          %799 = vmatprep.mubr.bf16.mxu0 0
          %800 = vmatmul.mubr.bf16.gmra.mxu0 %v660
          %v801 = vpop.f32.mrf.mxu0
          %v802 = vadd.f32 %v685, %v801
          %v803 = vpop.f32.mrf.mxu0
          %v804 = vpop.f32.mrf.mxu0
          %v805 = vadd.f32 %v685, %v804
          %v806 = vpop.f32.mrf.mxu0
          %807 = vmatprep.mubr.bf16.mxu0 0
          %808 = vmatmul.mubr.bf16.gmra.mxu0 %v661
          %v809 = vpop.f32.mrf.mxu0
          %v810 = vadd.f32 %v685, %v809
          %v811 = vpop.f32.mrf.mxu0
          %v812 = vpop.f32.mrf.mxu0
          %v813 = vadd.f32 %v685, %v812
          %v814 = vpop.f32.mrf.mxu0
          %815 = vmatprep.mubr.bf16.mxu0 0
          %816 = vmatmul.mubr.bf16.gmra.mxu0 %v662
          %v817 = vpop.f32.mrf.mxu0
          %v818 = vadd.f32 %v685, %v817
          %v819 = vpop.f32.mrf.mxu0
          %v820 = vpop.f32.mrf.mxu0
          %v821 = vadd.f32 %v685, %v820
          %v822 = vpop.f32.mrf.mxu0
          %823 = vmatprep.mubr.bf16.mxu0 0
          %824 = vmatmul.mubr.bf16.gmra.mxu0 %v663
          %v825 = vpop.f32.mrf.mxu0
          %v826 = vadd.f32 %v685, %v825
          %v827 = vpop.f32.mrf.mxu0
          %v828 = vpop.f32.mrf.mxu0
          %v829 = vadd.f32 %v685, %v828
          %v830 = vpop.f32.mrf.mxu0
          %831 = vdwg.mxu0
          %v832 = vmax.f32 %v770, 0.0
          %v833 = vmax.f32 %v773, 0.0
          %v834 = vmax.f32 %v778, 0.0
          %v835 = vmax.f32 %v781, 0.0
          %v836 = vmax.f32 %v786, 0.0
          %v837 = vmax.f32 %v789, 0.0
          %v838 = vmax.f32 %v794, 0.0
          %v839 = vmax.f32 %v797, 0.0
          %v840 = vmax.f32 %v802, 0.0
          %v841 = vmax.f32 %v805, 0.0
          %v842 = vmax.f32 %v810, 0.0
          %v843 = vmax.f32 %v813, 0.0
          %v844 = vmax.f32 %v818, 0.0
          %v845 = vmax.f32 %v821, 0.0
          %v846 = vmax.f32 %v826, 0.0
          %v847 = vmax.f32 %v829, 0.0
          %v848 = vpack.c.bf16 %v833, %v832
          %v849 = vpack.c.bf16 %v835, %v834
          %v850 = vpack.c.bf16 %v837, %v836
          %v851 = vpack.c.bf16 %v839, %v838
          %v852 = vpack.c.bf16 %v841, %v840
          %v853 = vpack.c.bf16 %v843, %v842
          %v854 = vpack.c.bf16 %v845, %v844
          %v855 = vpack.c.bf16 %v847, %v846
          %v864 = vunpack.c.l.b16 %v848
          %v865 = vunpack.c.h.b16 %v848
          %v866 = vunpack.c.l.b16 %v849
          %v867 = vunpack.c.h.b16 %v849
          %v868 = vunpack.c.l.b16 %v850
          %v869 = vunpack.c.h.b16 %v850
          %v870 = vunpack.c.l.b16 %v851
          %v871 = vunpack.c.h.b16 %v851
          %v872 = vunpack.c.l.b16 %v852
          %v873 = vunpack.c.h.b16 %v852
          %v874 = vunpack.c.l.b16 %v853
          %v875 = vunpack.c.h.b16 %v853
          %v876 = vunpack.c.l.b16 %v854
          %v877 = vunpack.c.h.b16 %v854
          %v878 = vunpack.c.l.b16 %v855
          %v879 = vunpack.c.h.b16 %v855
          %v880 = vpack.c.b16 %v864, %v864
          %v881 = vpack.c.b16 %v865, %v865
          %v882 = vpack.c.b16 %v866, %v866
          %v883 = vpack.c.b16 %v867, %v867
          %v884 = vpack.c.b16 %v868, %v868
          %v885 = vpack.c.b16 %v869, %v869
          %v886 = vpack.c.b16 %v870, %v870
          %v887 = vpack.c.b16 %v871, %v871
          %v888 = vpack.c.b16 %v872, %v872
          %v889 = vpack.c.b16 %v873, %v873
          %v890 = vpack.c.b16 %v874, %v874
          %v891 = vpack.c.b16 %v875, %v875
          %v892 = vpack.c.b16 %v876, %v876
          %v893 = vpack.c.b16 %v877, %v877
          %v894 = vpack.c.b16 %v878, %v878
          %v895 = vpack.c.b16 %v879, %v879
          %912 = vst [vmem:[%s340] sm:$0xf] %v880
          %913 = vst [vmem:[%s340 + $0x4] sm:$0xf] %v881
          %914 = vst [vmem:[%s340 + $0x8] sm:$0xf] %v882
          %915 = vst [vmem:[%s340 + $0xc] sm:$0xf] %v883
          %916 = vst [vmem:[%s340 + $0x10] sm:$0xf] %v884
          %917 = vst [vmem:[%s340 + $0x14] sm:$0xf] %v885
          %918 = vst [vmem:[%s340 + $0x18] sm:$0xf] %v886
          %919 = vst [vmem:[%s340 + $0x1c] sm:$0xf] %v887
          %920 = vst [vmem:[%s340 + $0x20] sm:$0xf] %v888
          %921 = vst [vmem:[%s340 + $0x24] sm:$0xf] %v889
          %922 = vst [vmem:[%s340 + $0x28] sm:$0xf] %v890
          %923 = vst [vmem:[%s340 + $0x2c] sm:$0xf] %v891
          %924 = vst [vmem:[%s340 + $0x30] sm:$0xf] %v892
          %925 = vst [vmem:[%s340 + $0x34] sm:$0xf] %v893
          %926 = vst [vmem:[%s340 + $0x38] sm:$0xf] %v894
          %927 = vst [vmem:[%s340 + $0x3c] sm:$0xf] %v895
        $region85: #{gcn_forward.3} parent=72 // pred_fallthru
          _
        %s928 = smul.u32 16, %s19
        %p929 = scmp.lt.s32.totalorder %s928, 31
        %s930 = scalar_select %p929, %s928, 31
        %s931 = smul.addr %s930, 4
        %s932 = scalar_lea.vmem %s4, %s931
        // Predicated region
        $region86: #{gcn_forward.3} parent=72 // pred_check
          %p933 = pneg %p141
        $region87: #{gcn_forward.3} parent=72 // pred_check_branch
          %935 = sbr.rel (%p933) target = $region89
        $region88: #{gcn_forward.3} parent=72 // pred_region
          %s936 = smul.u32 16, %s19
        $region89: #{gcn_forward.3} parent=72 // pred_fallthru
          _
      $region73: #{gcn_forward.3} parent=5 // pred_fallthru
        _
      %p937 = scmp.le.s32.totalorder 2, %s10
      // Predicated region
      $region90: #{gcn_forward.3} parent=5 // pred_check
        %p938 = pneg %p937
      $region91: #{gcn_forward.3} parent=5 // pred_check_branch
        %940 = sbr.rel (%p938) target = $region93
      $region92: #{gcn_forward.3} parent=5 // pred_region
        %s941 = ssub.s32 %s10, 2
        // Predicated region
        $region94: #{gcn_forward.3} parent=92 // pred_check
          %p942 = pneg %p147
        $region95: #{gcn_forward.3} parent=92 // pred_check_branch
          %944 = sbr.rel (%p942) target = $region97
        $region96: #{gcn_forward.3} parent=92 // pred_region
          %s945 = smul.u32 16, %s21
          %p946 = scmp.lt.s32.totalorder %s945, 31
          %s947 = scalar_select %p946, %s945, 31
          %s948 = smul.addr %s947, 4
          %s949 = scalar_lea.vmem %s4, %s948
        $region97: #{gcn_forward.3} parent=92 // pred_fallthru
          _
      $region93: #{gcn_forward.3} parent=5 // pred_fallthru
        _
    $region6: #{gcn_forward.3} parent=1 // loop_footer
      %s14 = sadd.s32 1, %s10
    $region7: #{gcn_forward.3} parent=1 // loop_footer_branch
      %9 = sbr.rel target = $region3
    $region8: #{gcn_forward.3} parent=1 // loop_exit
      _

// kernel: gcn_forward.5
$region0: #{gcn_forward.5}
  #allocation0 [shape = 'u32[]', space=smem, size = 0x4, offset = 0x4, fixed_abs, tag = 'smem constant byte address 0x4 - core index']
  #allocation1 [shape = 'u32[144,128]{1,0:T(1,128)}', space=vmem, size = 0x12000, scoped, tag = 'internal scratch']
  %s0 = inlined_call_operand.vmem [shape: bf16[256,128], index: 0, kind: input, shape index: {}]
  %s1 = inlined_call_operand.vmem [shape: bf16[128,128], index: 1, kind: input, shape index: {}]
  %s2 = inlined_call_operand.vmem [shape: f32[1,128], index: 2, kind: input, shape index: {}]
  %s3 = inlined_call_operand.vmem [shape: bf16[128,128], index: 3, kind: input, shape index: {}]
  %s4 = inlined_call_operand.vmem [shape: f32[256,128], index: 4, kind: output, shape index: {}]
  %s5 = sld [smem:[#allocation0]]
  $region49: #{gcn_forward.5} parent=0
    _
  %s7 = ssub.s32 1, %s5
  %s8 = scalar_select 0, %s7, %s5
  loop: start=0, step=1, limit=4
  $region2: #{gcn_forward.5} parent=0 // loop_pre_header
    _
  $region3: #{gcn_forward.5} parent=0 // loop_header
    %s10 = sphi 0, %s14
    %p11 = scmp.ge.s32.totalorder %s10, 4
    %s20 = sphi 0, %s22
    %s23 = sphi 0, %s20
    %s24 = sphi 0, %s23
    %s40 = sphi 0, %s24
    %s44 = sphi 0, %s44
    %s46 = sphi 0, %s44
    %s47 = sphi 0, %s46
    %s61 = sphi 0, %s47
    %s65 = sphi 0, %s65
    %s67 = sphi 0, %s65
    %s68 = sphi 0, %s67
    %s82 = sphi 0, %s68
    %s86 = sphi 0, %s86
    %s88 = sphi 0, %s86
    %s89 = sphi 0, %s88
    %s103 = sphi 0, %s89
    %s109 = sphi 0, %s111
    %s112 = sphi 0, %s109
    %s113 = sphi 0, %s112
    %s129 = sphi 0, %s113
  $region4: #{gcn_forward.5} parent=0 // loop_header_branch
    %13 = sbr.rel (%p11) target = $region8
  $region5: #{gcn_forward.5} parent=0 // loop_body
    %s15 = ssub.s32 %s10, 1
    %s16 = ssub.s32 %s10, 2
    %s17 = sadd.s32 %s10, 1
    %s18 = ssub.s32 %s10, %s17
    %p19 = scmp.eq.s32.totalorder %s18, 0
    %s21 = sadd.s32 %s20, 1
    %s22 = scalar_select %p19, %s20, %s21
    %p25 = pneg %p19
    %p26 = scmp.eq.s32.totalorder %s10, 1
    %p27 = por %p25, %p26
    %p28 = scmp.ne.s32.totalorder %s20, %s23
    %p29 = scmp.eq.s32.totalorder %s10, 0
    %p30 = por %p28, %p29
    %p31 = scmp.ne.s32.totalorder %s20, %s23
    %p32 = scmp.eq.s32.totalorder %s15, 1
    %p33 = por %p31, %p32
    %p34 = scmp.ne.s32.totalorder %s23, %s24
    %p35 = scmp.eq.s32.totalorder %s15, 0
    %p36 = por %p34, %p35
    %p37 = scmp.ne.s32.totalorder %s23, %s24
    %p38 = scmp.eq.s32.totalorder %s16, 1
    %p39 = por %p37, %p38
    %p41 = scmp.ne.s32.totalorder %s24, %s40
    %p42 = scmp.eq.s32.totalorder %s16, 0
    %p43 = por %p41, %p42
    %s45 = sadd.s32 %s44, 1
    %p48 = scmp.eq.s32.totalorder %s10, 1
    %p49 = scmp.ne.s32.totalorder %s44, %s46
    %p50 = scmp.eq.s32.totalorder %s10, 0
    %p51 = por %p49, %p50
    %p52 = scmp.ne.s32.totalorder %s44, %s46
    %p53 = scmp.eq.s32.totalorder %s15, 1
    %p54 = por %p52, %p53
    %p55 = scmp.ne.s32.totalorder %s46, %s47
    %p56 = scmp.eq.s32.totalorder %s15, 0
    %p57 = por %p55, %p56
    %p58 = scmp.ne.s32.totalorder %s46, %s47
    %p59 = scmp.eq.s32.totalorder %s16, 1
    %p60 = por %p58, %p59
    %p62 = scmp.ne.s32.totalorder %s47, %s61
    %p63 = scmp.eq.s32.totalorder %s16, 0
    %p64 = por %p62, %p63
    %s66 = sadd.s32 %s65, 1
    %p69 = scmp.eq.s32.totalorder %s10, 1
    %p70 = scmp.ne.s32.totalorder %s65, %s67
    %p71 = scmp.eq.s32.totalorder %s10, 0
    %p72 = por %p70, %p71
    %p73 = scmp.ne.s32.totalorder %s65, %s67
    %p74 = scmp.eq.s32.totalorder %s15, 1
    %p75 = por %p73, %p74
    %p76 = scmp.ne.s32.totalorder %s67, %s68
    %p77 = scmp.eq.s32.totalorder %s15, 0
    %p78 = por %p76, %p77
    %p79 = scmp.ne.s32.totalorder %s67, %s68
    %p80 = scmp.eq.s32.totalorder %s16, 1
    %p81 = por %p79, %p80
    %p83 = scmp.ne.s32.totalorder %s68, %s82
    %p84 = scmp.eq.s32.totalorder %s16, 0
    %p85 = por %p83, %p84
    %s87 = sadd.s32 %s86, 1
    %p90 = scmp.eq.s32.totalorder %s10, 1
    %p91 = scmp.ne.s32.totalorder %s86, %s88
    %p92 = scmp.eq.s32.totalorder %s10, 0
    %p93 = por %p91, %p92
    %p94 = scmp.ne.s32.totalorder %s86, %s88
    %p95 = scmp.eq.s32.totalorder %s15, 1
    %p96 = por %p94, %p95
    %p97 = scmp.ne.s32.totalorder %s88, %s89
    %p98 = scmp.eq.s32.totalorder %s15, 0
    %p99 = por %p97, %p98
    %p100 = scmp.ne.s32.totalorder %s88, %s89
    %p101 = scmp.eq.s32.totalorder %s16, 1
    %p102 = por %p100, %p101
    %p104 = scmp.ne.s32.totalorder %s89, %s103
    %p105 = scmp.eq.s32.totalorder %s16, 0
    %p106 = por %p104, %p105
    %s107 = ssub.s32 %s10, %s17
    %p108 = scmp.eq.s32.totalorder %s107, 0
    %s110 = sadd.s32 %s109, 1
    %s111 = scalar_select %p108, %s109, %s110
    %p114 = pneg %p108
    %p115 = scmp.eq.s32.totalorder %s10, 1
    %p116 = por %p114, %p115
    %p117 = scmp.ne.s32.totalorder %s109, %s112
    %p118 = scmp.eq.s32.totalorder %s10, 0
    %p119 = por %p117, %p118
    %p120 = scmp.ne.s32.totalorder %s109, %s112
    %p121 = scmp.eq.s32.totalorder %s15, 1
    %p122 = por %p120, %p121
    %p123 = scmp.ne.s32.totalorder %s112, %s113
    %p124 = scmp.eq.s32.totalorder %s15, 0
    %p125 = por %p123, %p124
    %p126 = scmp.ne.s32.totalorder %s112, %s113
    %p127 = scmp.eq.s32.totalorder %s16, 1
    %p128 = por %p126, %p127
    %p130 = scmp.ne.s32.totalorder %s113, %s129
    %p131 = scmp.eq.s32.totalorder %s16, 0
    %p132 = por %p130, %p131
    %p133 = scmp.le.s32.totalorder 1, %s10
    %p134 = scmp.lt.s32.totalorder %s10, 3
    %p135 = pnand %p133, %p134
    %p136 = pneg %p135
    // Predicated region
    $region9: #{gcn_forward.5} parent=5 // pred_check
      _
    $region10: #{gcn_forward.5} parent=5 // pred_check_branch
      %138 = sbr.rel (%p135) target = $region12
    $region11: #{gcn_forward.5} parent=5 // pred_region
      %s139 = ssub.s32 %s10, 1
      // Predicated region
      $region13: #{gcn_forward.5} parent=11 // pred_check
        %p140 = pneg %p57
      $region14: #{gcn_forward.5} parent=11 // pred_check_branch
        %142 = sbr.rel (%p140) target = $region16
      $region15: #{gcn_forward.5} parent=11 // pred_region
        _
      $region16: #{gcn_forward.5} parent=11 // pred_fallthru
        _
      // Predicated region
      $region17: #{gcn_forward.5} parent=11 // pred_check
        %p143 = pneg %p78
      $region18: #{gcn_forward.5} parent=11 // pred_check_branch
        %145 = sbr.rel (%p143) target = $region20
      $region19: #{gcn_forward.5} parent=11 // pred_region
        _
      $region20: #{gcn_forward.5} parent=11 // pred_fallthru
        _
      // Predicated region
      $region21: #{gcn_forward.5} parent=11 // pred_check
        %p146 = pneg %p99
      $region22: #{gcn_forward.5} parent=11 // pred_check_branch
        %148 = sbr.rel (%p146) target = $region24
      $region23: #{gcn_forward.5} parent=11 // pred_region
        _
      $region24: #{gcn_forward.5} parent=11 // pred_fallthru
        _
    $region12: #{gcn_forward.5} parent=5 // pred_fallthru
      _
    %p149 = scmp.lt.s32.totalorder %s10, 2
    // Predicated region
    $region25: #{gcn_forward.5} parent=5 // pred_check
      %p150 = pneg %p149
    $region26: #{gcn_forward.5} parent=5 // pred_check_branch
      %152 = sbr.rel (%p150) target = $region28
    $region27: #{gcn_forward.5} parent=5 // pred_region
      // Predicated region
      $region29: #{gcn_forward.5} parent=27 // pred_check
        %p153 = pneg %p30
      $region30: #{gcn_forward.5} parent=27 // pred_check_branch
        %155 = sbr.rel (%p153) target = $region32
      $region31: #{gcn_forward.5} parent=27 // pred_region
        %s156 = smul.u32 16, %s10
        %p157 = scmp.lt.s32.totalorder %s156, 31
        %s158 = scalar_select %p157, %s156, 31
        %s159 = smul.addr %s158, 4
        %s160 = scalar_lea.vmem %s0, %s159
        %s161 = smul.u32 16, %s10
      $region32: #{gcn_forward.5} parent=27 // pred_fallthru
        _
    $region28: #{gcn_forward.5} parent=5 // pred_fallthru
      _
    %p162 = scmp.le.s32.totalorder 1, %s10
    %p163 = scmp.lt.s32.totalorder %s10, 3
    %p164 = pnand %p162, %p163
    %p165 = pneg %p164
    // Predicated region
    $region33: #{gcn_forward.5} parent=5 // pred_check
      _
    $region34: #{gcn_forward.5} parent=5 // pred_check_branch
      %167 = sbr.rel (%p164) target = $region36
    $region35: #{gcn_forward.5} parent=5 // pred_region
      %s168 = ssub.s32 %s10, 1
      %s169 = smul.u32 16, %s15
      %p170 = scmp.lt.s32.totalorder %s169, 31
      %s171 = scalar_select %p170, %s169, 31
      %s172 = smul.addr %s171, 4
      %s173 = scalar_lea.vmem %s0, %s172
      %p174 = pneg %p36
      %p175 = pneg %p33
      %p176 = pneg %p57
      %p177 = pneg %p54
      %p178 = pneg %p78
      %p179 = pneg %p75
      %p180 = pneg %p99
      %p181 = pneg %p96
      %p182 = pneg %p125
      %p183 = pneg %p122
      %s184 = smul.u32 16, %s15
      %p185 = scmp.lt.s32.totalorder %s184, 31
      %s186 = scalar_select %p185, %s184, 31
      %s187 = smul.addr %s186, 8
      %s188 = scalar_lea.vmem %s4, %s187
      %s189 = smul.u32 16, %s15
      %p190 = scmp.lt.s32.totalorder %s189, 31
      %s191 = scalar_select %p190, %s189, 31
      %s192 = smul.addr %s191, 4
      %s193 = scalar_lea.vmem %s0, %s192
      %s194 = smul.u32 16, %s15
      %s195 = smul.u32 16, %s15
      %p196 = scmp.lt.s32.totalorder %s195, 31
      %s197 = scalar_select %p196, %s195, 31
      %s198 = smul.addr %s197, 8
      %s199 = scalar_lea.vmem %s4, %s198
      %s200 = smul.u32 16, %s15
      %v202 = vld [vmem:[%s193] sm:$0xf]
      %v203 = vld [vmem:[%s193 + $0x4] sm:$0xf]
      %v204 = vld [vmem:[%s193 + $0x8] sm:$0xf]
      %v205 = vld [vmem:[%s193 + $0xc] sm:$0xf]
      %v206 = vld [vmem:[%s193 + $0x10] sm:$0xf]
      %v207 = vld [vmem:[%s193 + $0x14] sm:$0xf]
      %v208 = vld [vmem:[%s193 + $0x18] sm:$0xf]
      %v209 = vld [vmem:[%s193 + $0x1c] sm:$0xf]
      %v210 = vld [vmem:[%s193 + $0x20] sm:$0xf]
      %v211 = vld [vmem:[%s193 + $0x24] sm:$0xf]
      %v212 = vld [vmem:[%s193 + $0x28] sm:$0xf]
      %v213 = vld [vmem:[%s193 + $0x2c] sm:$0xf]
      %v214 = vld [vmem:[%s193 + $0x30] sm:$0xf]
      %v215 = vld [vmem:[%s193 + $0x34] sm:$0xf]
      %v216 = vld [vmem:[%s193 + $0x38] sm:$0xf]
      %v217 = vld [vmem:[%s193 + $0x3c] sm:$0xf]
      %v218 = vld [vmem:[%s1] sm:$0xf]
      %v219 = vld [vmem:[%s1 + $0x4] sm:$0xf]
      %v220 = vld [vmem:[%s1 + $0x8] sm:$0xf]
      %v221 = vld [vmem:[%s1 + $0xc] sm:$0xf]
      %v222 = vld [vmem:[%s1 + $0x10] sm:$0xf]
      %v223 = vld [vmem:[%s1 + $0x14] sm:$0xf]
      %v224 = vld [vmem:[%s1 + $0x18] sm:$0xf]
      %v225 = vld [vmem:[%s1 + $0x1c] sm:$0xf]
      %v226 = vld [vmem:[%s1 + $0x20] sm:$0xf]
      %v227 = vld [vmem:[%s1 + $0x24] sm:$0xf]
      %v228 = vld [vmem:[%s1 + $0x28] sm:$0xf]
      %v229 = vld [vmem:[%s1 + $0x2c] sm:$0xf]
      %v230 = vld [vmem:[%s1 + $0x30] sm:$0xf]
      %v231 = vld [vmem:[%s1 + $0x34] sm:$0xf]
      %v232 = vld [vmem:[%s1 + $0x38] sm:$0xf]
      %v233 = vld [vmem:[%s1 + $0x3c] sm:$0xf]
      %v234 = vld [vmem:[%s2] sm:$0x1]
      %v236 = vlaneseq
      %v237 = vshrl.u32 %v236, 7
      %v238 = vsub.s32 0, %v237
      %v239 = vrot.slane %v234, %v238
      %v257 = vunpack.c.l.b16 %v202
      %v258 = vunpack.c.l.b16 %v203
      %v259 = vunpack.c.l.b16 %v204
      %v260 = vunpack.c.l.b16 %v205
      %v261 = vunpack.c.l.b16 %v206
      %v262 = vunpack.c.l.b16 %v207
      %v263 = vunpack.c.l.b16 %v208
      %v264 = vunpack.c.l.b16 %v209
      %v265 = vunpack.c.l.b16 %v210
      %v266 = vunpack.c.l.b16 %v211
      %v267 = vunpack.c.l.b16 %v212
      %v268 = vunpack.c.l.b16 %v213
      %v269 = vunpack.c.l.b16 %v214
      %v270 = vunpack.c.l.b16 %v215
      %v271 = vunpack.c.l.b16 %v216
      %v272 = vunpack.c.l.b16 %v217
      %v273 = vpack.c.b16 %v258, %v257
      %v274 = vpack.c.b16 %v260, %v259
      %v275 = vpack.c.b16 %v262, %v261
      %v276 = vpack.c.b16 %v264, %v263
      %v277 = vpack.c.b16 %v266, %v265
      %v278 = vpack.c.b16 %v268, %v267
      %v279 = vpack.c.b16 %v270, %v269
      %v280 = vpack.c.b16 %v272, %v271
      %v305 = vunpack.c.l.b16 %v218
      %v306 = vunpack.c.l.b16 %v219
      %v307 = vunpack.c.l.b16 %v220
      %v308 = vunpack.c.l.b16 %v221
      %v309 = vunpack.c.l.b16 %v222
      %v310 = vunpack.c.l.b16 %v223
      %v311 = vunpack.c.l.b16 %v224
      %v312 = vunpack.c.l.b16 %v225
      %v313 = vunpack.c.l.b16 %v226
      %v314 = vunpack.c.l.b16 %v227
      %v315 = vunpack.c.l.b16 %v228
      %v316 = vunpack.c.l.b16 %v229
      %v317 = vunpack.c.l.b16 %v230
      %v318 = vunpack.c.l.b16 %v231
      %v319 = vunpack.c.l.b16 %v232
      %v320 = vunpack.c.l.b16 %v233
      %v321 = vpack.c.b16 %v306, %v305
      %v322 = vpack.c.b16 %v308, %v307
      %v323 = vpack.c.b16 %v310, %v309
      %v324 = vpack.c.b16 %v312, %v311
      %v325 = vpack.c.b16 %v314, %v313
      %v326 = vpack.c.b16 %v316, %v315
      %v327 = vpack.c.b16 %v318, %v317
      %v328 = vpack.c.b16 %v320, %v319
      %337 = vmatprep.subr.bf16.mxu0 0
      %338 = vmatpush1.bf16.msra.mxu0 %v328
      %339 = vmatprep.subr.bf16.mxu0 0
      %340 = vmatpush1.bf16.msra.mxu0 %v327
      %341 = vmatprep.subr.bf16.mxu0 0
      %342 = vmatpush1.bf16.msra.mxu0 %v326
      %343 = vmatprep.subr.bf16.mxu0 0
      %344 = vmatpush1.bf16.msra.mxu0 %v325
      %345 = vmatprep.subr.bf16.mxu0 0
      %346 = vmatpush1.bf16.msra.mxu0 %v324
      %347 = vmatprep.subr.bf16.mxu0 0
      %348 = vmatpush1.bf16.msra.mxu0 %v323
      %349 = vmatprep.subr.bf16.mxu0 0
      %350 = vmatpush1.bf16.msra.mxu0 %v322
      %351 = vmatprep.subr.bf16.mxu0 0
      %352 = vmatpush1.bf16.msra.mxu0 %v321
      %353 = vmatprep.subr.bf16.mxu0 0
      %354 = vmatpush2.bf16.msra.mxu0 0
      %355 = vmatprep.subr.bf16.mxu0 0
      %356 = vmatpush2.bf16.msra.mxu0 0
      %357 = vmatprep.subr.bf16.mxu0 0
      %358 = vmatpush2.bf16.msra.mxu0 0
      %359 = vmatprep.subr.bf16.mxu0 0
      %360 = vmatpush2.bf16.msra.mxu0 0
      %361 = vmatprep.subr.bf16.mxu0 0
      %362 = vmatpush2.bf16.msra.mxu0 0
      %363 = vmatprep.subr.bf16.mxu0 0
      %364 = vmatpush2.bf16.msra.mxu0 0
      %365 = vmatprep.subr.bf16.mxu0 0
      %366 = vmatpush2.bf16.msra.mxu0 0
      %367 = vmatprep.subr.bf16.mxu0 0
      %368 = vmatpush2.bf16.msra.mxu0 0
      %369 = vmatprep.mubr.bf16.mxu0 0
      %370 = vmatmul.mubr.bf16.gmra.mxu0 %v273
      %v371 = vpop.f32.mrf.mxu0
      %v372 = vadd.f32 %v239, %v371
      %v373 = vpop.f32.mrf.mxu0
      %v374 = vpop.f32.mrf.mxu0
      %v375 = vadd.f32 %v239, %v374
      %v376 = vpop.f32.mrf.mxu0
      %377 = vmatprep.mubr.bf16.mxu0 0
      %378 = vmatmul.mubr.bf16.gmra.mxu0 %v274
      %v379 = vpop.f32.mrf.mxu0
      %v380 = vadd.f32 %v239, %v379
      %v381 = vpop.f32.mrf.mxu0
      %v382 = vpop.f32.mrf.mxu0
      %v383 = vadd.f32 %v239, %v382
      %v384 = vpop.f32.mrf.mxu0
      %385 = vmatprep.mubr.bf16.mxu0 0
      %386 = vmatmul.mubr.bf16.gmra.mxu0 %v275
      %v387 = vpop.f32.mrf.mxu0
      %v388 = vadd.f32 %v239, %v387
      %v389 = vpop.f32.mrf.mxu0
      %v390 = vpop.f32.mrf.mxu0
      %v391 = vadd.f32 %v239, %v390
      %v392 = vpop.f32.mrf.mxu0
      %393 = vmatprep.mubr.bf16.mxu0 0
      %394 = vmatmul.mubr.bf16.gmra.mxu0 %v276
      %v395 = vpop.f32.mrf.mxu0
      %v396 = vadd.f32 %v239, %v395
      %v397 = vpop.f32.mrf.mxu0
      %v398 = vpop.f32.mrf.mxu0
      %v399 = vadd.f32 %v239, %v398
      %v400 = vpop.f32.mrf.mxu0
      %401 = vmatprep.mubr.bf16.mxu0 0
      %402 = vmatmul.mubr.bf16.gmra.mxu0 %v277
      %v403 = vpop.f32.mrf.mxu0
      %v404 = vadd.f32 %v239, %v403
      %v405 = vpop.f32.mrf.mxu0
      %v406 = vpop.f32.mrf.mxu0
      %v407 = vadd.f32 %v239, %v406
      %v408 = vpop.f32.mrf.mxu0
      %409 = vmatprep.mubr.bf16.mxu0 0
      %410 = vmatmul.mubr.bf16.gmra.mxu0 %v278
      %v411 = vpop.f32.mrf.mxu0
      %v412 = vadd.f32 %v239, %v411
      %v413 = vpop.f32.mrf.mxu0
      %v414 = vpop.f32.mrf.mxu0
      %v415 = vadd.f32 %v239, %v414
      %v416 = vpop.f32.mrf.mxu0
      %417 = vmatprep.mubr.bf16.mxu0 0
      %418 = vmatmul.mubr.bf16.gmra.mxu0 %v279
      %v419 = vpop.f32.mrf.mxu0
      %v420 = vadd.f32 %v239, %v419
      %v421 = vpop.f32.mrf.mxu0
      %v422 = vpop.f32.mrf.mxu0
      %v423 = vadd.f32 %v239, %v422
      %v424 = vpop.f32.mrf.mxu0
      %425 = vmatprep.mubr.bf16.mxu0 0
      %426 = vmatmul.mubr.bf16.gmra.mxu0 %v280
      %v427 = vpop.f32.mrf.mxu0
      %v428 = vadd.f32 %v239, %v427
      %v429 = vpop.f32.mrf.mxu0
      %v430 = vpop.f32.mrf.mxu0
      %v431 = vadd.f32 %v239, %v430
      %v432 = vpop.f32.mrf.mxu0
      %433 = vdwg.mxu0
      %v434 = vpack.c.bf16 %v375, %v372
      %v435 = vpack.c.bf16 %v383, %v380
      %v436 = vpack.c.bf16 %v391, %v388
      %v437 = vpack.c.bf16 %v399, %v396
      %v438 = vpack.c.bf16 %v407, %v404
      %v439 = vpack.c.bf16 %v415, %v412
      %v440 = vpack.c.bf16 %v423, %v420
      %v441 = vpack.c.bf16 %v431, %v428
      %v442 = vld [vmem:[%s3] sm:$0xf]
      %v443 = vld [vmem:[%s3 + $0x4] sm:$0xf]
      %v444 = vld [vmem:[%s3 + $0x8] sm:$0xf]
      %v445 = vld [vmem:[%s3 + $0xc] sm:$0xf]
      %v446 = vld [vmem:[%s3 + $0x10] sm:$0xf]
      %v447 = vld [vmem:[%s3 + $0x14] sm:$0xf]
      %v448 = vld [vmem:[%s3 + $0x18] sm:$0xf]
      %v449 = vld [vmem:[%s3 + $0x1c] sm:$0xf]
      %v450 = vld [vmem:[%s3 + $0x20] sm:$0xf]
      %v451 = vld [vmem:[%s3 + $0x24] sm:$0xf]
      %v452 = vld [vmem:[%s3 + $0x28] sm:$0xf]
      %v453 = vld [vmem:[%s3 + $0x2c] sm:$0xf]
      %v454 = vld [vmem:[%s3 + $0x30] sm:$0xf]
      %v455 = vld [vmem:[%s3 + $0x34] sm:$0xf]
      %v456 = vld [vmem:[%s3 + $0x38] sm:$0xf]
      %v457 = vld [vmem:[%s3 + $0x3c] sm:$0xf]
      %v474 = vunpack.c.l.b16 %v442
      %v475 = vunpack.c.l.b16 %v443
      %v476 = vunpack.c.l.b16 %v444
      %v477 = vunpack.c.l.b16 %v445
      %v478 = vunpack.c.l.b16 %v446
      %v479 = vunpack.c.l.b16 %v447
      %v480 = vunpack.c.l.b16 %v448
      %v481 = vunpack.c.l.b16 %v449
      %v482 = vunpack.c.l.b16 %v450
      %v483 = vunpack.c.l.b16 %v451
      %v484 = vunpack.c.l.b16 %v452
      %v485 = vunpack.c.l.b16 %v453
      %v486 = vunpack.c.l.b16 %v454
      %v487 = vunpack.c.l.b16 %v455
      %v488 = vunpack.c.l.b16 %v456
      %v489 = vunpack.c.l.b16 %v457
      %v490 = vpack.c.b16 %v475, %v474
      %v491 = vpack.c.b16 %v477, %v476
      %v492 = vpack.c.b16 %v479, %v478
      %v493 = vpack.c.b16 %v481, %v480
      %v494 = vpack.c.b16 %v483, %v482
      %v495 = vpack.c.b16 %v485, %v484
      %v496 = vpack.c.b16 %v487, %v486
      %v497 = vpack.c.b16 %v489, %v488
      %506 = vmatprep.subr.bf16.mxu0 0
      %507 = vmatpush1.bf16.msra.mxu0 %v497
      %508 = vmatprep.subr.bf16.mxu0 0
      %509 = vmatpush1.bf16.msra.mxu0 %v496
      %510 = vmatprep.subr.bf16.mxu0 0
      %511 = vmatpush1.bf16.msra.mxu0 %v495
      %512 = vmatprep.subr.bf16.mxu0 0
      %513 = vmatpush1.bf16.msra.mxu0 %v494
      %514 = vmatprep.subr.bf16.mxu0 0
      %515 = vmatpush1.bf16.msra.mxu0 %v493
      %516 = vmatprep.subr.bf16.mxu0 0
      %517 = vmatpush1.bf16.msra.mxu0 %v492
      %518 = vmatprep.subr.bf16.mxu0 0
      %519 = vmatpush1.bf16.msra.mxu0 %v491
      %520 = vmatprep.subr.bf16.mxu0 0
      %521 = vmatpush1.bf16.msra.mxu0 %v490
      %522 = vmatprep.subr.bf16.mxu0 0
      %523 = vmatpush2.bf16.msra.mxu0 0
      %524 = vmatprep.subr.bf16.mxu0 0
      %525 = vmatpush2.bf16.msra.mxu0 0
      %526 = vmatprep.subr.bf16.mxu0 0
      %527 = vmatpush2.bf16.msra.mxu0 0
      %528 = vmatprep.subr.bf16.mxu0 0
      %529 = vmatpush2.bf16.msra.mxu0 0
      %530 = vmatprep.subr.bf16.mxu0 0
      %531 = vmatpush2.bf16.msra.mxu0 0
      %532 = vmatprep.subr.bf16.mxu0 0
      %533 = vmatpush2.bf16.msra.mxu0 0
      %534 = vmatprep.subr.bf16.mxu0 0
      %535 = vmatpush2.bf16.msra.mxu0 0
      %536 = vmatprep.subr.bf16.mxu0 0
      %537 = vmatpush2.bf16.msra.mxu0 0
      %538 = vmatprep.mubr.bf16.mxu0 0
      %539 = vmatmul.mubr.bf16.gmra.mxu0 %v434
      %v540 = vpop.f32.mrf.mxu0
      %v541 = vadd.f32 0.0, %v540
      %v542 = vpop.f32.mrf.mxu0
      %v543 = vpop.f32.mrf.mxu0
      %v544 = vadd.f32 0.0, %v543
      %v545 = vpop.f32.mrf.mxu0
      %546 = vmatprep.mubr.bf16.mxu0 0
      %547 = vmatmul.mubr.bf16.gmra.mxu0 %v435
      %v548 = vpop.f32.mrf.mxu0
      %v549 = vadd.f32 0.0, %v548
      %v550 = vpop.f32.mrf.mxu0
      %v551 = vpop.f32.mrf.mxu0
      %v552 = vadd.f32 0.0, %v551
      %v553 = vpop.f32.mrf.mxu0
      %554 = vmatprep.mubr.bf16.mxu0 0
      %555 = vmatmul.mubr.bf16.gmra.mxu0 %v436
      %v556 = vpop.f32.mrf.mxu0
      %v557 = vadd.f32 0.0, %v556
      %v558 = vpop.f32.mrf.mxu0
      %v559 = vpop.f32.mrf.mxu0
      %v560 = vadd.f32 0.0, %v559
      %v561 = vpop.f32.mrf.mxu0
      %562 = vmatprep.mubr.bf16.mxu0 0
      %563 = vmatmul.mubr.bf16.gmra.mxu0 %v437
      %v564 = vpop.f32.mrf.mxu0
      %v565 = vadd.f32 0.0, %v564
      %v566 = vpop.f32.mrf.mxu0
      %v567 = vpop.f32.mrf.mxu0
      %v568 = vadd.f32 0.0, %v567
      %v569 = vpop.f32.mrf.mxu0
      %570 = vmatprep.mubr.bf16.mxu0 0
      %571 = vmatmul.mubr.bf16.gmra.mxu0 %v438
      %v572 = vpop.f32.mrf.mxu0
      %v573 = vadd.f32 0.0, %v572
      %v574 = vpop.f32.mrf.mxu0
      %v575 = vpop.f32.mrf.mxu0
      %v576 = vadd.f32 0.0, %v575
      %v577 = vpop.f32.mrf.mxu0
      %578 = vmatprep.mubr.bf16.mxu0 0
      %579 = vmatmul.mubr.bf16.gmra.mxu0 %v439
      %v580 = vpop.f32.mrf.mxu0
      %v581 = vadd.f32 0.0, %v580
      %v582 = vpop.f32.mrf.mxu0
      %v583 = vpop.f32.mrf.mxu0
      %v584 = vadd.f32 0.0, %v583
      %v585 = vpop.f32.mrf.mxu0
      %586 = vmatprep.mubr.bf16.mxu0 0
      %587 = vmatmul.mubr.bf16.gmra.mxu0 %v440
      %v588 = vpop.f32.mrf.mxu0
      %v589 = vadd.f32 0.0, %v588
      %v590 = vpop.f32.mrf.mxu0
      %v591 = vpop.f32.mrf.mxu0
      %v592 = vadd.f32 0.0, %v591
      %v593 = vpop.f32.mrf.mxu0
      %594 = vmatprep.mubr.bf16.mxu0 0
      %595 = vmatmul.mubr.bf16.gmra.mxu0 %v441
      %v596 = vpop.f32.mrf.mxu0
      %v597 = vadd.f32 0.0, %v596
      %v598 = vpop.f32.mrf.mxu0
      %v599 = vpop.f32.mrf.mxu0
      %v600 = vadd.f32 0.0, %v599
      %v601 = vpop.f32.mrf.mxu0
      %602 = vdwg.mxu0
      %v603 = vlaneseq
      %v604 = vand.u32 %v603, 127
      %vm605 = vcmp.lt.s32.totalorder %v604, 8
      %v606 = vsel %vm605, %v541, -1e+30
      %v607 = vsel %vm605, %v544, -1e+30
      %v608 = vsel %vm605, %v549, -1e+30
      %v609 = vsel %vm605, %v552, -1e+30
      %v610 = vsel %vm605, %v557, -1e+30
      %v611 = vsel %vm605, %v560, -1e+30
      %v612 = vsel %vm605, %v565, -1e+30
      %v613 = vsel %vm605, %v568, -1e+30
      %v614 = vsel %vm605, %v573, -1e+30
      %v615 = vsel %vm605, %v576, -1e+30
      %v616 = vsel %vm605, %v581, -1e+30
      %v617 = vsel %vm605, %v584, -1e+30
      %v618 = vsel %vm605, %v589, -1e+30
      %v619 = vsel %vm605, %v592, -1e+30
      %v620 = vsel %vm605, %v597, -1e+30
      %v621 = vsel %vm605, %v600, -1e+30
      %622 = vmax.xlane.f32.xlu0 %v606
      %v623 = vpop.xlane.xlu0 %622
      %624 = vmax.xlane.f32.xlu0 %v607
      %v625 = vpop.xlane.xlu0 %624
      %626 = vmax.xlane.f32.xlu0 %v608
      %v627 = vpop.xlane.xlu0 %626
      %628 = vmax.xlane.f32.xlu0 %v609
      %v629 = vpop.xlane.xlu0 %628
      %630 = vmax.xlane.f32.xlu0 %v610
      %v631 = vpop.xlane.xlu0 %630
      %632 = vmax.xlane.f32.xlu0 %v611
      %v633 = vpop.xlane.xlu0 %632
      %634 = vmax.xlane.f32.xlu0 %v612
      %v635 = vpop.xlane.xlu0 %634
      %636 = vmax.xlane.f32.xlu0 %v613
      %v637 = vpop.xlane.xlu0 %636
      %638 = vmax.xlane.f32.xlu0 %v614
      %v639 = vpop.xlane.xlu0 %638
      %640 = vmax.xlane.f32.xlu0 %v615
      %v641 = vpop.xlane.xlu0 %640
      %642 = vmax.xlane.f32.xlu0 %v616
      %v643 = vpop.xlane.xlu0 %642
      %644 = vmax.xlane.f32.xlu0 %v617
      %v645 = vpop.xlane.xlu0 %644
      %646 = vmax.xlane.f32.xlu0 %v618
      %v647 = vpop.xlane.xlu0 %646
      %648 = vmax.xlane.f32.xlu0 %v619
      %v649 = vpop.xlane.xlu0 %648
      %650 = vmax.xlane.f32.xlu0 %v620
      %v651 = vpop.xlane.xlu0 %650
      %652 = vmax.xlane.f32.xlu0 %v621
      %v653 = vpop.xlane.xlu0 %652
      %v654 = vsub.f32 %v606, %v623
      %v655 = vsub.f32 %v607, %v625
      %v656 = vsub.f32 %v608, %v627
      %v657 = vsub.f32 %v609, %v629
      %v658 = vsub.f32 %v610, %v631
      %v659 = vsub.f32 %v611, %v633
      %v660 = vsub.f32 %v612, %v635
      %v661 = vsub.f32 %v613, %v637
      %v662 = vsub.f32 %v614, %v639
      %v663 = vsub.f32 %v615, %v641
      %v664 = vsub.f32 %v616, %v643
      %v665 = vsub.f32 %v617, %v645
      %v666 = vsub.f32 %v618, %v647
      %v667 = vsub.f32 %v619, %v649
      %v668 = vsub.f32 %v620, %v651
      %v669 = vsub.f32 %v621, %v653
      %v670 = vmul.f32 %v654, 1.442695
      %v671 = vpow.pop %v670
      %v672 = vmul.f32 %v655, 1.442695
      %v673 = vpow.pop %v672
      %v674 = vmul.f32 %v656, 1.442695
      %v675 = vpow.pop %v674
      %v676 = vmul.f32 %v657, 1.442695
      %v677 = vpow.pop %v676
      %v678 = vmul.f32 %v658, 1.442695
      %v679 = vpow.pop %v678
      %v680 = vmul.f32 %v659, 1.442695
      %v681 = vpow.pop %v680
      %v682 = vmul.f32 %v660, 1.442695
      %v683 = vpow.pop %v682
      %v684 = vmul.f32 %v661, 1.442695
      %v685 = vpow.pop %v684
      %v686 = vmul.f32 %v662, 1.442695
      %v687 = vpow.pop %v686
      %v688 = vmul.f32 %v663, 1.442695
      %v689 = vpow.pop %v688
      %v690 = vmul.f32 %v664, 1.442695
      %v691 = vpow.pop %v690
      %v692 = vmul.f32 %v665, 1.442695
      %v693 = vpow.pop %v692
      %v694 = vmul.f32 %v666, 1.442695
      %v695 = vpow.pop %v694
      %v696 = vmul.f32 %v667, 1.442695
      %v697 = vpow.pop %v696
      %v698 = vmul.f32 %v668, 1.442695
      %v699 = vpow.pop %v698
      %v700 = vmul.f32 %v669, 1.442695
      %v701 = vpow.pop %v700
      %702 = vadd.xlane.f32.xlu0 %v671
      %v703 = vpop.xlane.xlu0 %702
      %704 = vadd.xlane.f32.xlu0 %v673
      %v705 = vpop.xlane.xlu0 %704
      %706 = vadd.xlane.f32.xlu0 %v675
      %v707 = vpop.xlane.xlu0 %706
      %708 = vadd.xlane.f32.xlu0 %v677
      %v709 = vpop.xlane.xlu0 %708
      %710 = vadd.xlane.f32.xlu0 %v679
      %v711 = vpop.xlane.xlu0 %710
      %712 = vadd.xlane.f32.xlu0 %v681
      %v713 = vpop.xlane.xlu0 %712
      %714 = vadd.xlane.f32.xlu0 %v683
      %v715 = vpop.xlane.xlu0 %714
      %716 = vadd.xlane.f32.xlu0 %v685
      %v717 = vpop.xlane.xlu0 %716
      %718 = vadd.xlane.f32.xlu0 %v687
      %v719 = vpop.xlane.xlu0 %718
      %720 = vadd.xlane.f32.xlu0 %v689
      %v721 = vpop.xlane.xlu0 %720
      %722 = vadd.xlane.f32.xlu0 %v691
      %v723 = vpop.xlane.xlu0 %722
      %724 = vadd.xlane.f32.xlu0 %v693
      %v725 = vpop.xlane.xlu0 %724
      %726 = vadd.xlane.f32.xlu0 %v695
      %v727 = vpop.xlane.xlu0 %726
      %728 = vadd.xlane.f32.xlu0 %v697
      %v729 = vpop.xlane.xlu0 %728
      %730 = vadd.xlane.f32.xlu0 %v699
      %v731 = vpop.xlane.xlu0 %730
      %732 = vadd.xlane.f32.xlu0 %v701
      %v733 = vpop.xlane.xlu0 %732
      %v734 = vlog2.pop %v703
      %v735 = vmul.f32 %v734, 0.6931472
      %v736 = vlog2.pop %v705
      %v737 = vmul.f32 %v736, 0.6931472
      %v738 = vlog2.pop %v707
      %v739 = vmul.f32 %v738, 0.6931472
      %v740 = vlog2.pop %v709
      %v741 = vmul.f32 %v740, 0.6931472
      %v742 = vlog2.pop %v711
      %v743 = vmul.f32 %v742, 0.6931472
      %v744 = vlog2.pop %v713
      %v745 = vmul.f32 %v744, 0.6931472
      %v746 = vlog2.pop %v715
      %v747 = vmul.f32 %v746, 0.6931472
      %v748 = vlog2.pop %v717
      %v749 = vmul.f32 %v748, 0.6931472
      %v750 = vlog2.pop %v719
      %v751 = vmul.f32 %v750, 0.6931472
      %v752 = vlog2.pop %v721
      %v753 = vmul.f32 %v752, 0.6931472
      %v754 = vlog2.pop %v723
      %v755 = vmul.f32 %v754, 0.6931472
      %v756 = vlog2.pop %v725
      %v757 = vmul.f32 %v756, 0.6931472
      %v758 = vlog2.pop %v727
      %v759 = vmul.f32 %v758, 0.6931472
      %v760 = vlog2.pop %v729
      %v761 = vmul.f32 %v760, 0.6931472
      %v762 = vlog2.pop %v731
      %v763 = vmul.f32 %v762, 0.6931472
      %v764 = vlog2.pop %v733
      %v765 = vmul.f32 %v764, 0.6931472
      %v766 = vsub.f32 %v654, %v735
      %v767 = vsub.f32 %v655, %v737
      %v768 = vsub.f32 %v656, %v739
      %v769 = vsub.f32 %v657, %v741
      %v770 = vsub.f32 %v658, %v743
      %v771 = vsub.f32 %v659, %v745
      %v772 = vsub.f32 %v660, %v747
      %v773 = vsub.f32 %v661, %v749
      %v774 = vsub.f32 %v662, %v751
      %v775 = vsub.f32 %v663, %v753
      %v776 = vsub.f32 %v664, %v755
      %v777 = vsub.f32 %v665, %v757
      %v778 = vsub.f32 %v666, %v759
      %v779 = vsub.f32 %v667, %v761
      %v780 = vsub.f32 %v668, %v763
      %v781 = vsub.f32 %v669, %v765
      %782 = vst [vmem:[%s199] sm:$0xff] %v766
      %783 = vst [vmem:[%s199 + $0x8] sm:$0xff] %v767
      %784 = vst [vmem:[%s199 + $0x10] sm:$0xff] %v768
      %785 = vst [vmem:[%s199 + $0x18] sm:$0xff] %v769
      %786 = vst [vmem:[%s199 + $0x20] sm:$0xff] %v770
      %787 = vst [vmem:[%s199 + $0x28] sm:$0xff] %v771
      %788 = vst [vmem:[%s199 + $0x30] sm:$0xff] %v772
      %789 = vst [vmem:[%s199 + $0x38] sm:$0xff] %v773
      %790 = vst [vmem:[%s199 + $0x40] sm:$0xff] %v774
      %791 = vst [vmem:[%s199 + $0x48] sm:$0xff] %v775
      %792 = vst [vmem:[%s199 + $0x50] sm:$0xff] %v776
      %793 = vst [vmem:[%s199 + $0x58] sm:$0xff] %v777
      %794 = vst [vmem:[%s199 + $0x60] sm:$0xff] %v778
      %795 = vst [vmem:[%s199 + $0x68] sm:$0xff] %v779
      %796 = vst [vmem:[%s199 + $0x70] sm:$0xff] %v780
      %797 = vst [vmem:[%s199 + $0x78] sm:$0xff] %v781
      %s798 = smul.u32 16, %s15
      %p799 = scmp.lt.s32.totalorder %s798, 31
      %s800 = scalar_select %p799, %s798, 31
      %s801 = smul.addr %s800, 8
      %s802 = scalar_lea.vmem %s4, %s801
      // Predicated region
      $region37: #{gcn_forward.5} parent=35 // pred_check
        %p803 = pneg %p122
      $region38: #{gcn_forward.5} parent=35 // pred_check_branch
        %805 = sbr.rel (%p803) target = $region40
      $region39: #{gcn_forward.5} parent=35 // pred_region
        %s806 = smul.u32 16, %s15
      $region40: #{gcn_forward.5} parent=35 // pred_fallthru
        _
    $region36: #{gcn_forward.5} parent=5 // pred_fallthru
      _
    %p807 = scmp.le.s32.totalorder 2, %s10
    // Predicated region
    $region41: #{gcn_forward.5} parent=5 // pred_check
      %p808 = pneg %p807
    $region42: #{gcn_forward.5} parent=5 // pred_check_branch
      %810 = sbr.rel (%p808) target = $region44
    $region43: #{gcn_forward.5} parent=5 // pred_region
      %s811 = ssub.s32 %s10, 2
      // Predicated region
      $region45: #{gcn_forward.5} parent=43 // pred_check
        %p812 = pneg %p128
      $region46: #{gcn_forward.5} parent=43 // pred_check_branch
        %814 = sbr.rel (%p812) target = $region48
      $region47: #{gcn_forward.5} parent=43 // pred_region
        %s815 = smul.u32 16, %s16
        %p816 = scmp.lt.s32.totalorder %s815, 31
        %s817 = scalar_select %p816, %s815, 31
        %s818 = smul.addr %s817, 8
        %s819 = scalar_lea.vmem %s4, %s818
      $region48: #{gcn_forward.5} parent=43 // pred_fallthru
        _
    $region44: #{gcn_forward.5} parent=5 // pred_fallthru
      _
  $region6: #{gcn_forward.5} parent=0 // loop_footer
    %s14 = sadd.s32 1, %s10
  $region7: #{gcn_forward.5} parent=0 // loop_footer_branch
    %9 = sbr.rel target = $region3
  $region8: #{gcn_forward.5} parent=0 // loop_exit
    _

</llo_original>
